<compile_context>
chip_gen: v7x
topology: tpu7x:2x2x1
jax: 0.10.0
libtpu: 0.0.40
codegen_flags: <defaults>
</compile_context>

<pallas_src>
import jax
import jax.numpy as jnp
from jax import lax
from jax.experimental import pallas as pl
from jax.experimental.pallas import tpu as pltpu

LEAKY_SLOPE = 0.01  # torch.nn.LeakyReLU default


def _leaky(v):
    return jnp.where(v > 0, v, LEAKY_SLOPE * v)


# ----------------------------- fused Pallas kernel ---------------------------

def fused_forward_kernel(mu_ref,
                         A_ref, AT_ref, x0_ref, xe_wT_ref, xo_w_ref, yo_w_ref,
                         Win_ref, Wout_ref, bias_ref, outw_ref, outb_ref,
                         x_out_ref, y_out_ref):
    mu = mu_ref[0, 0]
    A = A_ref[...]                       # (M, N)
    AT = AT_ref[...]                     # (N, M)
    F = xe_wT_ref.shape[-1]
    CFp = bias_ref.shape[-1]
    L = Win_ref.shape[0]
    M = A.shape[0]

    # x_emb: Linear(1, F, bias=False) + LeakyReLU (K==1 matmul == broadcast mul)
    x = _leaky(x0_ref[...] * xe_wT_ref[...])          # (N, F)
    y = jnp.zeros((M, F), jnp.float32)                # overwritten by layer 0

    # Static per-layer loop over VMEM-resident stacked weights (L is small).
    # For large L switch this to lax.fori_loop or a grid axis.
    for l in range(L):
        # --- y_update_model3: y = ELU(mu * (A @ x - 1)) + 1 ---
        z = mu * (jnp.dot(A, x, preferred_element_type=jnp.float32) - 1.0)
        y = jnp.where(z > 0, z, jnp.exp(z) - 1.0) + 1.0               # (M, F)

        # --- x_update_model3 ---
        ATy = jnp.dot(AT, y, preferred_element_type=jnp.float32) - 1.0  # (N, F)

        Win = Win_ref[l]                 # (F, 2*CFp) = [t2 | t5] channel-batched
        Wout = Wout_ref[l]               # (2*CFp, 2F) = blockdiag(t1, t4)
        b = bias_ref[l]                  # (3, CFp): rows = t3, t6, 0.5 - sigmoid(t6)
        t3 = b[0:1, :]
        t6 = b[1:2, :]
        gconst = b[2:3, :]

        pre = jnp.dot(ATy, Win, preferred_element_type=jnp.float32)   # (N, 2*CFp)
        pre_f = pre[:, :CFp]
        pre_g = pre[:, CFp:]

        # sigmoid(v) == 0.5*tanh(0.5*v) + 0.5  (single EUP op per element)
        #   fout = sig(p+t3) + sig(p-t3) - 1 = 0.5*(tanh(.5(p+t3)) + tanh(.5(p-t3)))
        #   gout = sig(p+t6) - sig(t6)       = 0.5*tanh(.5(p+t6)) + (0.5 - sig(t6))
        fout = 0.5 * (jnp.tanh(0.5 * (pre_f + t3)) + jnp.tanh(0.5 * (pre_f - t3)))
        gout = 0.5 * jnp.tanh(0.5 * (pre_g + t6)) + gconst
        gate = jnp.concatenate([fout, gout], axis=-1)                 # (N, 2*CFp)

        fg = jnp.dot(gate, Wout, preferred_element_type=jnp.float32)  # (N, 2F)
        f_sum = fg[:, :F]
        g_sum = fg[:, F:]

        # sum_c (fout_c * x) == (sum_c fout_c) * x  (x shared across channels)
        out_res = x + f_sum * x + g_sum

        # base_emb(F, F, bias=True): Linear + LeakyReLU, then outer LeakyReLU
        h = (jnp.dot(out_res, outw_ref[l], preferred_element_type=jnp.float32)
             + outb_ref[l])
        x = _leaky(_leaky(h))

    # Final 1-dim output heads (base_emb(F, 1, bias=False)) — computed once.
    x_out_ref[...] = _leaky(jnp.sum(x * xo_w_ref[...], axis=-1, keepdims=True))
    y_out_ref[...] = _leaky(jnp.sum(y * yo_w_ref[...], axis=-1, keepdims=True))


# ------------------------------ host-side prep -------------------------------

def _round_up(a, b):
    return ((a + b - 1) // b) * b


def prepare_fused_params(params, nfeat):
    """Pack per-layer/per-channel params into lane-dense stacked arrays."""
    layers = params['layers']
    L = len(layers)
    C = layers[0]['t1'].shape[0]
    F = nfeat
    CF = C * F
    CFp = max(_round_up(CF, 128), 128)   # pad flattened channel axis to lanes

    def wide(w):    # (C,F,F) -> (F, CFp): column block c holds w[c]
        m = jnp.transpose(w, (1, 0, 2)).reshape(F, CF)
        return jnp.pad(m, ((0, 0), (0, CFp - CF)))

    def tall(w):    # (C,F,F) -> (CFp, F): row block c holds w[c]
        m = w.reshape(CF, F)
        return jnp.pad(m, ((0, CFp - CF), (0, 0)))

    def row(w):     # (C,1,F) -> (1, CFp)
        m = w.reshape(1, CF)
        return jnp.pad(m, ((0, 0), (0, CFp - CF)))

    Win, Wout, bias, outw, outb = [], [], [], [], []
    for lp in layers:
        # fused 256-wide input weight [t2 | t5]
        Win.append(jnp.concatenate([wide(lp['t2']), wide(lp['t5'])], axis=-1))
        # block-diagonal output weight: [f_sum | g_sum] = gate @ Wout
        wo = jnp.zeros((2 * CFp, 2 * F), jnp.float32)
        wo = wo.at[:CFp, :F].set(tall(lp['t1'])).at[CFp:, F:].set(tall(lp['t4']))
        Wout.append(wo)
        # biases packed as one (3, CFp) block; padded lanes stay exactly 0 so
        # the gates are 0 there (and padded t1/t4 rows are 0 as double safety)
        gconst = jnp.pad(0.5 - jax.nn.sigmoid(lp['t6'].reshape(1, CF)),
                         ((0, 0), (0, CFp - CF)))
        bias.append(jnp.concatenate([row(lp['t3']), row(lp['t6']), gconst], axis=0))
        outw.append(lp['out_wT'])
        outb.append(lp['out_b'])

    return {
        'Win': jnp.stack(Win),        # (L, F, 2*CFp)
        'Wout': jnp.stack(Wout),      # (L, 2*CFp, 2F)
        'bias': jnp.stack(bias),      # (L, 3, CFp)
        'out_wT': jnp.stack(outw),    # (L, F, F)
        'out_b': jnp.stack(outb),     # (L, 1, F)
        'n_layers': L,
        'CFp': CFp,
    }


# ------------------------------ wrapper ---------------------------------------

def framework_forward(A, x, y, mu, params, fused):
    del y  # dead for n_layers >= 1 (matches torch semantics)
    M, N = A.shape
    L = fused['n_layers']
    assert L >= 1
    mu_arr = jnp.full((1, 1), mu, dtype=jnp.float32)

    vmem = pl.BlockSpec(memory_space=pltpu.MemorySpace.VMEM)
    smem = pl.BlockSpec(memory_space=pltpu.MemorySpace.SMEM)

    # Single kernel invocation, no grid: every operand is a whole VMEM-resident
    # block (total well under 1 MiB here — no vmem_limit_bytes needed on any
    # generation; re-check the budget only if L grows into the hundreds on v7x).
    x_out, y_out = pl.pallas_call(
        fused_forward_kernel,
        out_shape=(jax.ShapeDtypeStruct((N, 1), jnp.float32),
                   jax.ShapeDtypeStruct((M, 1), jnp.float32)),
        in_specs=[smem] + [vmem] * 11,
        out_specs=(vmem, vmem),
    )(mu_arr, A, A.T, x,
      params['x_emb_wT'], params['x_out_w'], params['y_out_w'],
      fused['Win'], fused['Wout'], fused['bias'],
      fused['out_wT'], fused['out_b'])
    return x_out, y_out


# ------------------------- pure-JAX reference ---------------------------------

def ref_forward(A, x, y, mu, params):
    AT = A.T
    x = _leaky(x * params['x_emb_wT'])
    y = _leaky(y * params['y_emb_wT'])
    for lp in params['layers']:
        z = mu * (A @ x - 1.0)
        y = jnp.where(z > 0, z, jnp.exp(z) - 1.0) + 1.0
        ATy = AT @ y - 1.0
        f_acc = jnp.zeros_like(x)
        g_acc = jnp.zeros_like(x)
        for c in range(lp['t1'].shape[0]):
            pre = ATy @ lp['t2'][c]
            fout = (jax.nn.sigmoid(pre + lp['t3'][c])
                    + jax.nn.sigmoid(pre - lp['t3'][c]) - 1.0)
            f_acc = f_acc + fout @ lp['t1'][c]
            pre_g = ATy @ lp['t5'][c]
            gout = jax.nn.sigmoid(pre_g + lp['t6'][c]) - jax.nn.sigmoid(lp['t6'][c])
            g_acc = g_acc + gout @ lp['t4'][c]
        out_res = x + f_acc * x + g_acc
        x = _leaky(_leaky(out_res @ lp['out_wT'] + lp['out_b']))
    x = _leaky(jnp.sum(x * params['x_out_w'], axis=-1, keepdims=True))
    y = _leaky(jnp.sum(y * params['y_out_w'], axis=-1, keepdims=True))
    return x, y


# ------------------------------ params ----------------------------------------

def init_params(key, n_layers, channels, nfeat):
    C = channels + 6  # mode='ori' adds 6 channels
    scale = 0.1       # synthetic deterministic init (module uses randn)
    keys = jax.random.split(key, 4 + n_layers)
    params = {
        'x_emb_wT': scale * jax.random.normal(keys[0], (1, nfeat), jnp.float32),
        'y_emb_wT': scale * jax.random.normal(keys[1], (1, nfeat), jnp.float32),
        'x_out_w':  scale * jax.random.normal(keys[2], (1, nfeat), jnp.float32),
        'y_out_w':  scale * jax.random.normal(keys[3], (1, nfeat), jnp.float32),
        'layers': [],
    }
    for l in range(n_layers):
        k = jax.random.split(keys[4 + l], 8)
        params['layers'].append({
            't1': scale * jax.random.normal(k[0], (C, nfeat, nfeat), jnp.float32),
            't2': scale * jax.random.normal(k[1], (C, nfeat, nfeat), jnp.float32),
            't3': scale * jax.random.normal(k[2], (C, 1, nfeat), jnp.float32),
            't4': scale * jax.random.normal(k[3], (C, nfeat, nfeat), jnp.float32),
            't5': scale * jax.random.normal(k[4], (C, nfeat, nfeat), jnp.float32),
            't6': scale * jax.random.normal(k[5], (C, 1, nfeat), jnp.float32),
            'out_wT': scale * jax.random.normal(k[6], (nfeat, nfeat), jnp.float32),
            'out_b': scale * jax.random.normal(k[7], (1, nfeat), jnp.float32),
        })
    return params


# -------------------------------- main -----------------------------------------

if __name__ == "__main__":
    n_layers, channels, nfeat = 2, 4, 8   # framework_model1dim(2, 4, nfeat=8, mode='ori')
    M, N = 16, 16

    key = jax.random.PRNGKey(0)
    kA, kx, ky, kp = jax.random.split(key, 4)
    A = 0.25 * jax.random.normal(kA, (M, N), jnp.float32)
    x = jax.random.uniform(kx, (N, 1), dtype=jnp.float32)
    y = jax.random.uniform(ky, (M, 1), dtype=jnp.float32)
    mu = 0.5

    params = init_params(kp, n_layers, channels, nfeat)
    fused = prepare_fused_params(params, nfeat)

    x_out, y_out = framework_forward(A, x, y, mu, params, fused)
    jax.block_until_ready((x_out, y_out))

    x_ref, y_ref = ref_forward(A, x, y, mu, params)
    assert x_out.shape == (N, 1) and y_out.shape == (M, 1)
    assert jnp.allclose(x_out, x_ref, rtol=2e-3, atol=2e-3)
    assert jnp.allclose(y_out, y_ref, rtol=2e-3, atol=2e-3)

    print("KERNEL_OK")
</pallas_src>

<mosaic_0001>
module attributes {stable_mosaic.version = 11 : i64} {
  func.func @fused_forward_kernel(%arg0: memref<1x1xf32, #tpu.memory_space<smem>>, %arg1: memref<16x16xf32, #tpu.memory_space<vmem>>, %arg2: memref<16x16xf32, #tpu.memory_space<vmem>>, %arg3: memref<16x1xf32, #tpu.memory_space<vmem>>, %arg4: memref<1x8xf32, #tpu.memory_space<vmem>>, %arg5: memref<1x8xf32, #tpu.memory_space<vmem>>, %arg6: memref<1x8xf32, #tpu.memory_space<vmem>>, %arg7: memref<2x8x256xf32, #tpu.memory_space<vmem>>, %arg8: memref<2x256x16xf32, #tpu.memory_space<vmem>>, %arg9: memref<2x3x128xf32, #tpu.memory_space<vmem>>, %arg10: memref<2x8x8xf32, #tpu.memory_space<vmem>>, %arg11: memref<2x1x8xf32, #tpu.memory_space<vmem>>, %arg12: memref<16x1xf32, #tpu.memory_space<vmem>>, %arg13: memref<16x1xf32, #tpu.memory_space<vmem>>) attributes {dimension_semantics = [], scalar_prefetch = 0 : i64, scratch_operands = 0 : i64, tpu.core_type = #tpu.core_type<tc>} {
    %c0 = arith.constant 0 : index
    %c0_0 = arith.constant 0 : index
    %0 = memref.load %arg0[%c0, %c0_0] : memref<1x1xf32, #tpu.memory_space<smem>>
    %c0_1 = arith.constant 0 : index
    %c0_2 = arith.constant 0 : index
    %1 = vector.load %arg1[%c0_1, %c0_2] : memref<16x16xf32, #tpu.memory_space<vmem>>, vector<16x16xf32>
    %c0_3 = arith.constant 0 : index
    %c0_4 = arith.constant 0 : index
    %2 = vector.load %arg2[%c0_3, %c0_4] : memref<16x16xf32, #tpu.memory_space<vmem>>, vector<16x16xf32>
    %c0_5 = arith.constant 0 : index
    %c0_6 = arith.constant 0 : index
    %3 = vector.load %arg3[%c0_5, %c0_6] : memref<16x1xf32, #tpu.memory_space<vmem>>, vector<16x1xf32>
    %c0_7 = arith.constant 0 : index
    %c0_8 = arith.constant 0 : index
    %4 = vector.load %arg4[%c0_7, %c0_8] : memref<1x8xf32, #tpu.memory_space<vmem>>, vector<1x8xf32>
    %5 = vector.broadcast %3 : vector<16x1xf32> to vector<16x8xf32>
    %6 = vector.broadcast %4 : vector<1x8xf32> to vector<16x8xf32>
    %7 = arith.mulf %5, %6 : vector<16x8xf32>
    %cst = arith.constant 0.000000e+00 : f32
    %8 = vector.broadcast %cst : f32 to vector<16x8xf32>
    %9 = arith.cmpf ogt, %7, %8 : vector<16x8xf32>
    %cst_9 = arith.constant 0.00999999977 : f32
    %10 = vector.broadcast %cst_9 : f32 to vector<16x8xf32>
    %11 = arith.mulf %10, %7 : vector<16x8xf32>
    %12 = arith.select %9, %7, %11 : vector<16x8xi1>, vector<16x8xf32>
    %cst_10 = arith.constant dense<0.000000e+00> : vector<16x8xf32>
    %13 = tpu.matmul %1, %12, %cst_10 {dimension_numbers = #tpu.dot_dimension_numbers<[1], [0], [0], [1], [0, 0, 1, 1], [], []>} : vector<16x16xf32>, vector<16x8xf32>, vector<16x8xf32> -> vector<16x8xf32>
    %cst_11 = arith.constant 1.000000e+00 : f32
    %14 = vector.broadcast %cst_11 : f32 to vector<16x8xf32>
    %15 = arith.subf %13, %14 : vector<16x8xf32>
    %16 = vector.broadcast %0 : f32 to vector<16x8xf32>
    %17 = arith.mulf %16, %15 : vector<16x8xf32>
    %cst_12 = arith.constant 0.000000e+00 : f32
    %18 = vector.broadcast %cst_12 : f32 to vector<16x8xf32>
    %19 = arith.cmpf ogt, %17, %18 : vector<16x8xf32>
    %20 = math.exp %17 : vector<16x8xf32>
    %cst_13 = arith.constant 1.000000e+00 : f32
    %21 = vector.broadcast %cst_13 : f32 to vector<16x8xf32>
    %22 = arith.subf %20, %21 : vector<16x8xf32>
    %23 = arith.select %19, %17, %22 : vector<16x8xi1>, vector<16x8xf32>
    %cst_14 = arith.constant 1.000000e+00 : f32
    %24 = vector.broadcast %cst_14 : f32 to vector<16x8xf32>
    %25 = arith.addf %23, %24 : vector<16x8xf32>
    %cst_15 = arith.constant dense<0.000000e+00> : vector<16x8xf32>
    %26 = tpu.matmul %2, %25, %cst_15 {dimension_numbers = #tpu.dot_dimension_numbers<[1], [0], [0], [1], [0, 0, 1, 1], [], []>} : vector<16x16xf32>, vector<16x8xf32>, vector<16x8xf32> -> vector<16x8xf32>
    %cst_16 = arith.constant 1.000000e+00 : f32
    %27 = vector.broadcast %cst_16 : f32 to vector<16x8xf32>
    %28 = arith.subf %26, %27 : vector<16x8xf32>
    %c0_17 = arith.constant 0 : index
    %c0_18 = arith.constant 0 : index
    %c0_19 = arith.constant 0 : index
    %29 = vector.load %arg7[%c0_17, %c0_18, %c0_19] : memref<2x8x256xf32, #tpu.memory_space<vmem>>, vector<1x8x256xf32>
    %30 = vector.shape_cast %29 : vector<1x8x256xf32> to vector<8x256xf32>
    %c0_20 = arith.constant 0 : index
    %c0_21 = arith.constant 0 : index
    %c0_22 = arith.constant 0 : index
    %31 = vector.load %arg8[%c0_20, %c0_21, %c0_22] : memref<2x256x16xf32, #tpu.memory_space<vmem>>, vector<1x256x16xf32>
    %32 = vector.shape_cast %31 : vector<1x256x16xf32> to vector<256x16xf32>
    %c0_23 = arith.constant 0 : index
    %c0_24 = arith.constant 0 : index
    %c0_25 = arith.constant 0 : index
    %33 = vector.load %arg9[%c0_23, %c0_24, %c0_25] : memref<2x3x128xf32, #tpu.memory_space<vmem>>, vector<1x3x128xf32>
    %34 = vector.shape_cast %33 : vector<1x3x128xf32> to vector<3x128xf32>
    %35 = vector.extract_strided_slice %34 {offsets = [0, 0], sizes = [1, 128], strides = [1, 1]} : vector<3x128xf32> to vector<1x128xf32>
    %36 = vector.extract_strided_slice %34 {offsets = [1, 0], sizes = [1, 128], strides = [1, 1]} : vector<3x128xf32> to vector<1x128xf32>
    %37 = vector.extract_strided_slice %34 {offsets = [2, 0], sizes = [1, 128], strides = [1, 1]} : vector<3x128xf32> to vector<1x128xf32>
    %cst_26 = arith.constant dense<0.000000e+00> : vector<16x256xf32>
    %38 = tpu.matmul %28, %30, %cst_26 {dimension_numbers = #tpu.dot_dimension_numbers<[1], [0], [0], [1], [0, 0, 1, 1], [], []>} : vector<16x8xf32>, vector<8x256xf32>, vector<16x256xf32> -> vector<16x256xf32>
    %39 = vector.extract_strided_slice %38 {offsets = [0, 0], sizes = [16, 128], strides = [1, 1]} : vector<16x256xf32> to vector<16x128xf32>
    %40 = vector.extract_strided_slice %38 {offsets = [0, 128], sizes = [16, 128], strides = [1, 1]} : vector<16x256xf32> to vector<16x128xf32>
    %41 = vector.broadcast %35 : vector<1x128xf32> to vector<16x128xf32>
    %42 = arith.addf %39, %41 : vector<16x128xf32>
    %cst_27 = arith.constant 5.000000e-01 : f32
    %43 = vector.broadcast %cst_27 : f32 to vector<16x128xf32>
    %44 = arith.mulf %43, %42 : vector<16x128xf32>
    %45 = math.tanh %44 : vector<16x128xf32>
    %46 = vector.broadcast %35 : vector<1x128xf32> to vector<16x128xf32>
    %47 = arith.subf %39, %46 : vector<16x128xf32>
    %cst_28 = arith.constant 5.000000e-01 : f32
    %48 = vector.broadcast %cst_28 : f32 to vector<16x128xf32>
    %49 = arith.mulf %48, %47 : vector<16x128xf32>
    %50 = math.tanh %49 : vector<16x128xf32>
    %51 = arith.addf %45, %50 : vector<16x128xf32>
    %cst_29 = arith.constant 5.000000e-01 : f32
    %52 = vector.broadcast %cst_29 : f32 to vector<16x128xf32>
    %53 = arith.mulf %52, %51 : vector<16x128xf32>
    %54 = vector.broadcast %36 : vector<1x128xf32> to vector<16x128xf32>
    %55 = arith.addf %40, %54 : vector<16x128xf32>
    %cst_30 = arith.constant 5.000000e-01 : f32
    %56 = vector.broadcast %cst_30 : f32 to vector<16x128xf32>
    %57 = arith.mulf %56, %55 : vector<16x128xf32>
    %58 = math.tanh %57 : vector<16x128xf32>
    %cst_31 = arith.constant 5.000000e-01 : f32
    %59 = vector.broadcast %cst_31 : f32 to vector<16x128xf32>
    %60 = arith.mulf %59, %58 : vector<16x128xf32>
    %61 = vector.broadcast %37 : vector<1x128xf32> to vector<16x128xf32>
    %62 = arith.addf %60, %61 : vector<16x128xf32>
    %63 = tpu.concatenate %53, %62 in 1 : vector<16x128xf32>, vector<16x128xf32> -> vector<16x256xf32>
    %cst_32 = arith.constant dense<0.000000e+00> : vector<16x16xf32>
    %64 = tpu.matmul %63, %32, %cst_32 {dimension_numbers = #tpu.dot_dimension_numbers<[1], [0], [0], [1], [0, 0, 1, 1], [], []>} : vector<16x256xf32>, vector<256x16xf32>, vector<16x16xf32> -> vector<16x16xf32>
    %65 = vector.extract_strided_slice %64 {offsets = [0, 0], sizes = [16, 8], strides = [1, 1]} : vector<16x16xf32> to vector<16x8xf32>
    %66 = vector.extract_strided_slice %64 {offsets = [0, 8], sizes = [16, 8], strides = [1, 1]} : vector<16x16xf32> to vector<16x8xf32>
    %67 = arith.mulf %65, %12 : vector<16x8xf32>
    %68 = arith.addf %12, %67 : vector<16x8xf32>
    %69 = arith.addf %68, %66 : vector<16x8xf32>
    %c0_33 = arith.constant 0 : index
    %c0_34 = arith.constant 0 : index
    %c0_35 = arith.constant 0 : index
    %70 = vector.load %arg10[%c0_33, %c0_34, %c0_35] : memref<2x8x8xf32, #tpu.memory_space<vmem>>, vector<1x8x8xf32>
    %71 = vector.shape_cast %70 : vector<1x8x8xf32> to vector<8x8xf32>
    %cst_36 = arith.constant dense<0.000000e+00> : vector<16x8xf32>
    %72 = tpu.matmul %69, %71, %cst_36 {dimension_numbers = #tpu.dot_dimension_numbers<[1], [0], [0], [1], [0, 0, 1, 1], [], []>} : vector<16x8xf32>, vector<8x8xf32>, vector<16x8xf32> -> vector<16x8xf32>
    %c0_37 = arith.constant 0 : index
    %c0_38 = arith.constant 0 : index
    %c0_39 = arith.constant 0 : index
    %73 = vector.load %arg11[%c0_37, %c0_38, %c0_39] : memref<2x1x8xf32, #tpu.memory_space<vmem>>, vector<1x1x8xf32>
    %74 = vector.shape_cast %73 : vector<1x1x8xf32> to vector<1x8xf32>
    %75 = vector.broadcast %74 : vector<1x8xf32> to vector<16x8xf32>
    %76 = arith.addf %72, %75 : vector<16x8xf32>
    %cst_40 = arith.constant 0.000000e+00 : f32
    %77 = vector.broadcast %cst_40 : f32 to vector<16x8xf32>
    %78 = arith.cmpf ogt, %76, %77 : vector<16x8xf32>
    %cst_41 = arith.constant 0.00999999977 : f32
    %79 = vector.broadcast %cst_41 : f32 to vector<16x8xf32>
    %80 = arith.mulf %79, %76 : vector<16x8xf32>
    %81 = arith.select %78, %76, %80 : vector<16x8xi1>, vector<16x8xf32>
    %cst_42 = arith.constant 0.000000e+00 : f32
    %82 = vector.broadcast %cst_42 : f32 to vector<16x8xf32>
    %83 = arith.cmpf ogt, %81, %82 : vector<16x8xf32>
    %cst_43 = arith.constant 0.00999999977 : f32
    %84 = vector.broadcast %cst_43 : f32 to vector<16x8xf32>
    %85 = arith.mulf %84, %81 : vector<16x8xf32>
    %86 = arith.select %83, %81, %85 : vector<16x8xi1>, vector<16x8xf32>
    %cst_44 = arith.constant dense<0.000000e+00> : vector<16x8xf32>
    %87 = tpu.matmul %1, %86, %cst_44 {dimension_numbers = #tpu.dot_dimension_numbers<[1], [0], [0], [1], [0, 0, 1, 1], [], []>} : vector<16x16xf32>, vector<16x8xf32>, vector<16x8xf32> -> vector<16x8xf32>
    %cst_45 = arith.constant 1.000000e+00 : f32
    %88 = vector.broadcast %cst_45 : f32 to vector<16x8xf32>
    %89 = arith.subf %87, %88 : vector<16x8xf32>
    %90 = vector.broadcast %0 : f32 to vector<16x8xf32>
    %91 = arith.mulf %90, %89 : vector<16x8xf32>
    %cst_46 = arith.constant 0.000000e+00 : f32
    %92 = vector.broadcast %cst_46 : f32 to vector<16x8xf32>
    %93 = arith.cmpf ogt, %91, %92 : vector<16x8xf32>
    %94 = math.exp %91 : vector<16x8xf32>
    %cst_47 = arith.constant 1.000000e+00 : f32
    %95 = vector.broadcast %cst_47 : f32 to vector<16x8xf32>
    %96 = arith.subf %94, %95 : vector<16x8xf32>
    %97 = arith.select %93, %91, %96 : vector<16x8xi1>, vector<16x8xf32>
    %cst_48 = arith.constant 1.000000e+00 : f32
    %98 = vector.broadcast %cst_48 : f32 to vector<16x8xf32>
    %99 = arith.addf %97, %98 : vector<16x8xf32>
    %cst_49 = arith.constant dense<0.000000e+00> : vector<16x8xf32>
    %100 = tpu.matmul %2, %99, %cst_49 {dimension_numbers = #tpu.dot_dimension_numbers<[1], [0], [0], [1], [0, 0, 1, 1], [], []>} : vector<16x16xf32>, vector<16x8xf32>, vector<16x8xf32> -> vector<16x8xf32>
    %cst_50 = arith.constant 1.000000e+00 : f32
    %101 = vector.broadcast %cst_50 : f32 to vector<16x8xf32>
    %102 = arith.subf %100, %101 : vector<16x8xf32>
    %c1 = arith.constant 1 : index
    %c0_51 = arith.constant 0 : index
    %c0_52 = arith.constant 0 : index
    %103 = vector.load %arg7[%c1, %c0_51, %c0_52] : memref<2x8x256xf32, #tpu.memory_space<vmem>>, vector<1x8x256xf32>
    %104 = vector.shape_cast %103 : vector<1x8x256xf32> to vector<8x256xf32>
    %c1_53 = arith.constant 1 : index
    %c0_54 = arith.constant 0 : index
    %c0_55 = arith.constant 0 : index
    %105 = vector.load %arg8[%c1_53, %c0_54, %c0_55] : memref<2x256x16xf32, #tpu.memory_space<vmem>>, vector<1x256x16xf32>
    %106 = vector.shape_cast %105 : vector<1x256x16xf32> to vector<256x16xf32>
    %c1_56 = arith.constant 1 : index
    %c0_57 = arith.constant 0 : index
    %c0_58 = arith.constant 0 : index
    %107 = vector.load %arg9[%c1_56, %c0_57, %c0_58] : memref<2x3x128xf32, #tpu.memory_space<vmem>>, vector<1x3x128xf32>
    %108 = vector.shape_cast %107 : vector<1x3x128xf32> to vector<3x128xf32>
    %109 = vector.extract_strided_slice %108 {offsets = [0, 0], sizes = [1, 128], strides = [1, 1]} : vector<3x128xf32> to vector<1x128xf32>
    %110 = vector.extract_strided_slice %108 {offsets = [1, 0], sizes = [1, 128], strides = [1, 1]} : vector<3x128xf32> to vector<1x128xf32>
    %111 = vector.extract_strided_slice %108 {offsets = [2, 0], sizes = [1, 128], strides = [1, 1]} : vector<3x128xf32> to vector<1x128xf32>
    %cst_59 = arith.constant dense<0.000000e+00> : vector<16x256xf32>
    %112 = tpu.matmul %102, %104, %cst_59 {dimension_numbers = #tpu.dot_dimension_numbers<[1], [0], [0], [1], [0, 0, 1, 1], [], []>} : vector<16x8xf32>, vector<8x256xf32>, vector<16x256xf32> -> vector<16x256xf32>
    %113 = vector.extract_strided_slice %112 {offsets = [0, 0], sizes = [16, 128], strides = [1, 1]} : vector<16x256xf32> to vector<16x128xf32>
    %114 = vector.extract_strided_slice %112 {offsets = [0, 128], sizes = [16, 128], strides = [1, 1]} : vector<16x256xf32> to vector<16x128xf32>
    %115 = vector.broadcast %109 : vector<1x128xf32> to vector<16x128xf32>
    %116 = arith.addf %113, %115 : vector<16x128xf32>
    %cst_60 = arith.constant 5.000000e-01 : f32
    %117 = vector.broadcast %cst_60 : f32 to vector<16x128xf32>
    %118 = arith.mulf %117, %116 : vector<16x128xf32>
    %119 = math.tanh %118 : vector<16x128xf32>
    %120 = vector.broadcast %109 : vector<1x128xf32> to vector<16x128xf32>
    %121 = arith.subf %113, %120 : vector<16x128xf32>
    %cst_61 = arith.constant 5.000000e-01 : f32
    %122 = vector.broadcast %cst_61 : f32 to vector<16x128xf32>
    %123 = arith.mulf %122, %121 : vector<16x128xf32>
    %124 = math.tanh %123 : vector<16x128xf32>
    %125 = arith.addf %119, %124 : vector<16x128xf32>
    %cst_62 = arith.constant 5.000000e-01 : f32
    %126 = vector.broadcast %cst_62 : f32 to vector<16x128xf32>
    %127 = arith.mulf %126, %125 : vector<16x128xf32>
    %128 = vector.broadcast %110 : vector<1x128xf32> to vector<16x128xf32>
    %129 = arith.addf %114, %128 : vector<16x128xf32>
    %cst_63 = arith.constant 5.000000e-01 : f32
    %130 = vector.broadcast %cst_63 : f32 to vector<16x128xf32>
    %131 = arith.mulf %130, %129 : vector<16x128xf32>
    %132 = math.tanh %131 : vector<16x128xf32>
    %cst_64 = arith.constant 5.000000e-01 : f32
    %133 = vector.broadcast %cst_64 : f32 to vector<16x128xf32>
    %134 = arith.mulf %133, %132 : vector<16x128xf32>
    %135 = vector.broadcast %111 : vector<1x128xf32> to vector<16x128xf32>
    %136 = arith.addf %134, %135 : vector<16x128xf32>
    %137 = tpu.concatenate %127, %136 in 1 : vector<16x128xf32>, vector<16x128xf32> -> vector<16x256xf32>
    %cst_65 = arith.constant dense<0.000000e+00> : vector<16x16xf32>
    %138 = tpu.matmul %137, %106, %cst_65 {dimension_numbers = #tpu.dot_dimension_numbers<[1], [0], [0], [1], [0, 0, 1, 1], [], []>} : vector<16x256xf32>, vector<256x16xf32>, vector<16x16xf32> -> vector<16x16xf32>
    %139 = vector.extract_strided_slice %138 {offsets = [0, 0], sizes = [16, 8], strides = [1, 1]} : vector<16x16xf32> to vector<16x8xf32>
    %140 = vector.extract_strided_slice %138 {offsets = [0, 8], sizes = [16, 8], strides = [1, 1]} : vector<16x16xf32> to vector<16x8xf32>
    %141 = arith.mulf %139, %86 : vector<16x8xf32>
    %142 = arith.addf %86, %141 : vector<16x8xf32>
    %143 = arith.addf %142, %140 : vector<16x8xf32>
    %c1_66 = arith.constant 1 : index
    %c0_67 = arith.constant 0 : index
    %c0_68 = arith.constant 0 : index
    %144 = vector.load %arg10[%c1_66, %c0_67, %c0_68] : memref<2x8x8xf32, #tpu.memory_space<vmem>>, vector<1x8x8xf32>
    %145 = vector.shape_cast %144 : vector<1x8x8xf32> to vector<8x8xf32>
    %cst_69 = arith.constant dense<0.000000e+00> : vector<16x8xf32>
    %146 = tpu.matmul %143, %145, %cst_69 {dimension_numbers = #tpu.dot_dimension_numbers<[1], [0], [0], [1], [0, 0, 1, 1], [], []>} : vector<16x8xf32>, vector<8x8xf32>, vector<16x8xf32> -> vector<16x8xf32>
    %c1_70 = arith.constant 1 : index
    %c0_71 = arith.constant 0 : index
    %c0_72 = arith.constant 0 : index
    %147 = vector.load %arg11[%c1_70, %c0_71, %c0_72] : memref<2x1x8xf32, #tpu.memory_space<vmem>>, vector<1x1x8xf32>
    %148 = vector.shape_cast %147 : vector<1x1x8xf32> to vector<1x8xf32>
    %149 = vector.broadcast %148 : vector<1x8xf32> to vector<16x8xf32>
    %150 = arith.addf %146, %149 : vector<16x8xf32>
    %cst_73 = arith.constant 0.000000e+00 : f32
    %151 = vector.broadcast %cst_73 : f32 to vector<16x8xf32>
    %152 = arith.cmpf ogt, %150, %151 : vector<16x8xf32>
    %cst_74 = arith.constant 0.00999999977 : f32
    %153 = vector.broadcast %cst_74 : f32 to vector<16x8xf32>
    %154 = arith.mulf %153, %150 : vector<16x8xf32>
    %155 = arith.select %152, %150, %154 : vector<16x8xi1>, vector<16x8xf32>
    %cst_75 = arith.constant 0.000000e+00 : f32
    %156 = vector.broadcast %cst_75 : f32 to vector<16x8xf32>
    %157 = arith.cmpf ogt, %155, %156 : vector<16x8xf32>
    %cst_76 = arith.constant 0.00999999977 : f32
    %158 = vector.broadcast %cst_76 : f32 to vector<16x8xf32>
    %159 = arith.mulf %158, %155 : vector<16x8xf32>
    %160 = arith.select %157, %155, %159 : vector<16x8xi1>, vector<16x8xf32>
    %c0_77 = arith.constant 0 : index
    %c0_78 = arith.constant 0 : index
    %161 = vector.load %arg5[%c0_77, %c0_78] : memref<1x8xf32, #tpu.memory_space<vmem>>, vector<1x8xf32>
    %162 = vector.broadcast %161 : vector<1x8xf32> to vector<16x8xf32>
    %163 = arith.mulf %160, %162 : vector<16x8xf32>
    %cst_79 = arith.constant dense<0.000000e+00> : vector<16xf32>
    %164 = vector.multi_reduction <add>, %163, %cst_79 [1] : vector<16x8xf32> to vector<16xf32>
    %165 = vector.shape_cast %164 : vector<16xf32> to vector<16x1xf32>
    %cst_80 = arith.constant 0.000000e+00 : f32
    %166 = vector.broadcast %cst_80 : f32 to vector<16x1xf32>
    %167 = arith.cmpf ogt, %165, %166 : vector<16x1xf32>
    %cst_81 = arith.constant 0.00999999977 : f32
    %168 = vector.broadcast %cst_81 : f32 to vector<16x1xf32>
    %169 = arith.mulf %168, %165 : vector<16x1xf32>
    %170 = arith.select %167, %165, %169 : vector<16x1xi1>, vector<16x1xf32>
    %c0_82 = arith.constant 0 : index
    %c0_83 = arith.constant 0 : index
    %171 = vector.load %arg12[%c0_82, %c0_83] : memref<16x1xf32, #tpu.memory_space<vmem>>, vector<16x1xf32>
    tpu.vector_store %arg12[%c0_82, %c0_83], %170 {strides = array<i32>} : memref<16x1xf32, #tpu.memory_space<vmem>>, vector<16x1xf32>,
    %c0_84 = arith.constant 0 : index
    %c0_85 = arith.constant 0 : index
    %172 = vector.load %arg6[%c0_84, %c0_85] : memref<1x8xf32, #tpu.memory_space<vmem>>, vector<1x8xf32>
    %173 = vector.broadcast %172 : vector<1x8xf32> to vector<16x8xf32>
    %174 = arith.mulf %99, %173 : vector<16x8xf32>
    %cst_86 = arith.constant dense<0.000000e+00> : vector<16xf32>
    %175 = vector.multi_reduction <add>, %174, %cst_86 [1] : vector<16x8xf32> to vector<16xf32>
    %176 = vector.shape_cast %175 : vector<16xf32> to vector<16x1xf32>
    %cst_87 = arith.constant 0.000000e+00 : f32
    %177 = vector.broadcast %cst_87 : f32 to vector<16x1xf32>
    %178 = arith.cmpf ogt, %176, %177 : vector<16x1xf32>
    %cst_88 = arith.constant 0.00999999977 : f32
    %179 = vector.broadcast %cst_88 : f32 to vector<16x1xf32>
    %180 = arith.mulf %179, %176 : vector<16x1xf32>
    %181 = arith.select %178, %176, %180 : vector<16x1xi1>, vector<16x1xf32>
    %c0_89 = arith.constant 0 : index
    %c0_90 = arith.constant 0 : index
    %182 = vector.load %arg13[%c0_89, %c0_90] : memref<16x1xf32, #tpu.memory_space<vmem>>, vector<16x1xf32>
    tpu.vector_store %arg13[%c0_89, %c0_90], %181 {strides = array<i32>} : memref<16x1xf32, #tpu.memory_space<vmem>>, vector<16x1xf32>,
    return
  }
}

</mosaic_0001>

<llo_original>
// kernel: tpu_custom_call.1
$region0: #{tpu_custom_call.1}
  #allocation0 [shape = 'u32[]', space=smem, size = 0x4, offset = 0x4, fixed_abs, tag = 'smem constant byte address 0x4 - core index']
  #allocation1 [shape = 'u32[144,128]{1,0:T(1,128)}', space=vmem, size = 0x12000, scoped, tag = 'internal scratch']
  #allocation2 [shape = 'f32[1,1]{1,0:T(1,128)S(6)}', space=smem, size = 0x200, scoped, tag = 'scoped memory for tpu_custom_call.1']
  %s0 = inlined_call_operand.<no memory space> [shape: f32[1,1], index: 0, kind: input, shape index: {}]
  %s1 = inlined_call_operand.vmem [shape: f32[16,16], index: 1, kind: input, shape index: {}]
  %s2 = inlined_call_operand.vmem [shape: f32[16,16], index: 2, kind: input, shape index: {}]
  %s3 = inlined_call_operand.vmem [shape: f32[16,1], index: 3, kind: input, shape index: {}]
  %s4 = inlined_call_operand.vmem [shape: f32[1,8], index: 4, kind: input, shape index: {}]
  %s5 = inlined_call_operand.vmem [shape: f32[1,8], index: 5, kind: input, shape index: {}]
  %s6 = inlined_call_operand.vmem [shape: f32[1,8], index: 6, kind: input, shape index: {}]
  %s7 = inlined_call_operand.vmem [shape: f32[2,8,256], index: 7, kind: input, shape index: {}]
  %s8 = inlined_call_operand.vmem [shape: f32[2,256,16], index: 8, kind: input, shape index: {}]
  %s9 = inlined_call_operand.vmem [shape: f32[2,3,128], index: 9, kind: input, shape index: {}]
  %s10 = inlined_call_operand.vmem [shape: f32[2,8,8], index: 10, kind: input, shape index: {}]
  %s11 = inlined_call_operand.vmem [shape: f32[2,1,8], index: 11, kind: input, shape index: {}]
  %s12 = inlined_call_operand.vmem [shape: f32[16,1], index: 12, kind: output, shape index: {0}]
  %s13 = inlined_call_operand.vmem [shape: f32[16,1], index: 13, kind: output, shape index: {1}]
  %14 = xla_tuple %s12, %s13
  %s15 = sld [smem:[#allocation0]]
  $region66: #{tpu_custom_call.1} parent=0
    _
  %s17 = ssub.s32 1, %s15
  %s18 = scalar_select 0, %s17, %s15
  %19 = sst [smem:[#allocation2]] %s0
  // Predicated region
  $region2: #{tpu_custom_call.1} parent=0 // pred_check
    _
  $region3: #{tpu_custom_call.1} parent=0 // pred_check_branch
    %21 = sbr.rel (0) target = $region5
  $region4: #{tpu_custom_call.1} parent=0 // pred_region
    _
  $region5: #{tpu_custom_call.1} parent=0 // pred_fallthru
    _
  // Predicated region
  $region6: #{tpu_custom_call.1} parent=0 // pred_check
    _
  $region7: #{tpu_custom_call.1} parent=0 // pred_check_branch
    %23 = sbr.rel (0) target = $region9
  $region8: #{tpu_custom_call.1} parent=0 // pred_region
    _
  $region9: #{tpu_custom_call.1} parent=0 // pred_fallthru
    _
  // Predicated region
  $region10: #{tpu_custom_call.1} parent=0 // pred_check
    _
  $region11: #{tpu_custom_call.1} parent=0 // pred_check_branch
    %25 = sbr.rel (0) target = $region13
  $region12: #{tpu_custom_call.1} parent=0 // pred_region
    _
  $region13: #{tpu_custom_call.1} parent=0 // pred_fallthru
    _
  // Predicated region
  $region14: #{tpu_custom_call.1} parent=0 // pred_check
    _
  $region15: #{tpu_custom_call.1} parent=0 // pred_check_branch
    %27 = sbr.rel (0) target = $region17
  $region16: #{tpu_custom_call.1} parent=0 // pred_region
    _
  $region17: #{tpu_custom_call.1} parent=0 // pred_fallthru
    _
  // Predicated region
  $region18: #{tpu_custom_call.1} parent=0 // pred_check
    _
  $region19: #{tpu_custom_call.1} parent=0 // pred_check_branch
    %29 = sbr.rel (0) target = $region21
  $region20: #{tpu_custom_call.1} parent=0 // pred_region
    _
  $region21: #{tpu_custom_call.1} parent=0 // pred_fallthru
    _
  // Predicated region
  $region22: #{tpu_custom_call.1} parent=0 // pred_check
    _
  $region23: #{tpu_custom_call.1} parent=0 // pred_check_branch
    %31 = sbr.rel (0) target = $region25
  $region24: #{tpu_custom_call.1} parent=0 // pred_region
    _
  $region25: #{tpu_custom_call.1} parent=0 // pred_fallthru
    _
  // Predicated region
  $region26: #{tpu_custom_call.1} parent=0 // pred_check
    _
  $region27: #{tpu_custom_call.1} parent=0 // pred_check_branch
    %33 = sbr.rel (0) target = $region29
  $region28: #{tpu_custom_call.1} parent=0 // pred_region
    _
  $region29: #{tpu_custom_call.1} parent=0 // pred_fallthru
    _
  // Predicated region
  $region30: #{tpu_custom_call.1} parent=0 // pred_check
    _
  $region31: #{tpu_custom_call.1} parent=0 // pred_check_branch
    %35 = sbr.rel (0) target = $region33
  $region32: #{tpu_custom_call.1} parent=0 // pred_region
    _
  $region33: #{tpu_custom_call.1} parent=0 // pred_fallthru
    _
  // Predicated region
  $region34: #{tpu_custom_call.1} parent=0 // pred_check
    _
  $region35: #{tpu_custom_call.1} parent=0 // pred_check_branch
    %37 = sbr.rel (0) target = $region37
  $region36: #{tpu_custom_call.1} parent=0 // pred_region
    _
  $region37: #{tpu_custom_call.1} parent=0 // pred_fallthru
    _
  // Predicated region
  $region38: #{tpu_custom_call.1} parent=0 // pred_check
    _
  $region39: #{tpu_custom_call.1} parent=0 // pred_check_branch
    %39 = sbr.rel (0) target = $region41
  $region40: #{tpu_custom_call.1} parent=0 // pred_region
    _
  $region41: #{tpu_custom_call.1} parent=0 // pred_fallthru
    _
  // Predicated region
  $region42: #{tpu_custom_call.1} parent=0 // pred_check
    _
  $region43: #{tpu_custom_call.1} parent=0 // pred_check_branch
    %41 = sbr.rel (0) target = $region45
  $region44: #{tpu_custom_call.1} parent=0 // pred_region
    _
  $region45: #{tpu_custom_call.1} parent=0 // pred_fallthru
    _
  // Predicated region
  $region46: #{tpu_custom_call.1} parent=0 // pred_check
    _
  $region47: #{tpu_custom_call.1} parent=0 // pred_check_branch
    %43 = sbr.rel (0) target = $region49
  $region48: #{tpu_custom_call.1} parent=0 // pred_region
    _
  $region49: #{tpu_custom_call.1} parent=0 // pred_fallthru
    _
  %s44 = sld [smem:[#allocation2]]
  %v45 = vld [vmem:[%s1] sm:$0xff]
  %v46 = vld [vmem:[%s1 + $0x8] sm:$0xff]
  %v47 = vld [vmem:[%s2] sm:$0xff]
  %v48 = vld [vmem:[%s2 + $0x8] sm:$0xff]
  %v49 = vld [vmem:[%s3] sm:$0xff]
  %v50 = vld [vmem:[%s3 + $0x8] sm:$0xff]
  %v51 = vld [vmem:[%s4] sm:$0x1]
  %53 = vset.pattern.permute.xlu0 0
  %54 = vperm.xlu0 %53, %v49
  %v55 = vpop.permute.xlu0 %54
  %58 = vset.pattern.permute.xlu0 0
  %59 = vperm.xlu0 %58, %v50
  %v60 = vpop.permute.xlu0 %59
  %v63 = vlaneseq
  %v64 = vshrl.u32 %v63, 7
  %v65 = vsub.s32 0, %v64
  %v66 = vrot.slane %v51, %v65
  %v68 = vmul.f32 %v55, %v66
  %v69 = vmul.f32 %v60, %v66
  %vm70 = vcmp.gt.f32.partialorder %v68, 0.0
  %vm71 = vcmp.gt.f32.partialorder %v69, 0.0
  %v72 = vmul.f32 %v68, 0.01
  %v73 = vmul.f32 %v69, 0.01
  %v74 = vsel %vm70, %v68, %v72
  %v75 = vsel %vm71, %v69, %v73
  %vm76 = vcmask 130048
  %v78 = vsel %vm76, %v45, 0
  %v81 = vsel %vm76, %v46, 0
  %83 = vmatprep.subr.mxu0 0.0
  %84 = vmatpush1.msra.mxu0 %v74
  %85 = vmatprep.subr.mxu0 0.0
  %86 = vmatpush1.msra.mxu0 %v75
  %87 = vmatprep.subr.mxu0 0.0
  %88 = vmatpush1.msra.mxu0 0.0
  %89 = vmatprep.subr.mxu0 0.0
  %90 = vmatpush1.msra.mxu0 0.0
  %91 = vmatprep.subr.mxu0 0.0
  %92 = vmatpush1.msra.mxu0 0.0
  %93 = vmatprep.subr.mxu0 0.0
  %94 = vmatpush1.msra.mxu0 0.0
  %95 = vmatprep.subr.mxu0 0.0
  %96 = vmatpush1.msra.mxu0 0.0
  %97 = vmatprep.subr.mxu0 0.0
  %98 = vmatpush1.msra.mxu0 0.0
  %99 = vmatprep.subr.mxu0 0.0
  %100 = vmatpush1.msra.mxu0 0.0
  %101 = vmatprep.subr.mxu0 0.0
  %102 = vmatpush1.msra.mxu0 0.0
  %103 = vmatprep.subr.mxu0 0.0
  %104 = vmatpush1.msra.mxu0 0.0
  %105 = vmatprep.subr.mxu0 0.0
  %106 = vmatpush1.msra.mxu0 0.0
  %107 = vmatprep.subr.mxu0 0.0
  %108 = vmatpush1.msra.mxu0 0.0
  %109 = vmatprep.subr.mxu0 0.0
  %110 = vmatpush1.msra.mxu0 0.0
  %111 = vmatprep.subr.mxu0 0.0
  %112 = vmatpush1.msra.mxu0 0.0
  %113 = vmatprep.subr.mxu0 0.0
  %114 = vmatpush1.msra.mxu0 0.0
  %115 = vmatprep.subr.mxu0 0.0
  %116 = vmatpush1.msra.mxu0 0.0
  %117 = vmatprep.subr.mxu0 0.0
  %118 = vmatpush1.msra.mxu0 0.0
  %119 = vmatprep.subr.mxu0 0.0
  %120 = vmatpush1.msra.mxu0 0.0
  %121 = vmatprep.subr.mxu0 0.0
  %122 = vmatpush1.msra.mxu0 0.0
  %123 = vmatprep.subr.mxu0 0.0
  %124 = vmatpush1.msra.mxu0 0.0
  %125 = vmatprep.subr.mxu0 0.0
  %126 = vmatpush1.msra.mxu0 0.0
  %127 = vmatprep.subr.mxu0 0.0
  %128 = vmatpush1.msra.mxu0 0.0
  %129 = vmatprep.subr.mxu0 0.0
  %130 = vmatpush1.msra.mxu0 0.0
  %131 = vmatprep.subr.mxu0 0.0
  %132 = vmatpush1.msra.mxu0 0.0
  %133 = vmatprep.subr.mxu0 0.0
  %134 = vmatpush1.msra.mxu0 0.0
  %135 = vmatprep.subr.mxu0 0.0
  %136 = vmatpush1.msra.mxu0 0.0
  %137 = vmatprep.subr.mxu0 0.0
  %138 = vmatpush1.msra.mxu0 0.0
  %139 = vmatprep.subr.mxu0 0.0
  %140 = vmatpush1.msra.mxu0 0.0
  %141 = vmatprep.subr.mxu0 0.0
  %142 = vmatpush1.msra.mxu0 0.0
  %143 = vmatprep.subr.mxu0 0.0
  %144 = vmatpush1.msra.mxu0 0.0
  %145 = vmatprep.subr.mxu0 0.0
  %146 = vmatpush1.msra.mxu0 0.0
  %147 = vmatprep.mubr.f32.mxu0 0.0
  %148 = vmatmul.mubr.f32.gmra.mrb[0].mxu0 %v78
  %v149 = vpop.f32.mrb[0].mxu0
  %v150 = vadd.f32 0.0, %v149
  %v151 = vpop.f32.mrb[0].mxu0
  %152 = vmatprep.mubr.f32.mxu0 0.0
  %153 = vmatmul.mubr.f32.gmra.mrb[0].mxu0 %v81
  %v154 = vpop.f32.mrb[0].mxu0
  %v155 = vadd.f32 0.0, %v154
  %v156 = vpop.f32.mrb[0].mxu0
  %157 = vdwg.mxu0
  %v158 = vsub.f32 %v150, 1.0
  %v159 = vsub.f32 %v155, 1.0
  %v160 = vstv %s44
  %v161 = vmul.f32 %v160, %v158
  %v162 = vmul.f32 %v160, %v159
  %vm163 = vcmp.gt.f32.partialorder %v161, 0.0
  %vm164 = vcmp.gt.f32.partialorder %v162, 0.0
  %v165 = vmul.f32 %v161, 1.442695
  %v166 = vpow.pop %v165
  %v167 = vmul.f32 %v162, 1.442695
  %v168 = vpow.pop %v167
  %v169 = vsub.f32 %v166, 1.0
  %v170 = vsub.f32 %v168, 1.0
  %v171 = vsel %vm163, %v161, %v169
  %v172 = vsel %vm164, %v162, %v170
  %v173 = vadd.f32 %v171, 1.0
  %v174 = vadd.f32 %v172, 1.0
  %v176 = vsel %vm76, %v47, 0
  %v179 = vsel %vm76, %v48, 0
  %181 = vmatprep.subr.mxu0 0.0
  %182 = vmatpush1.msra.mxu0 %v173
  %183 = vmatprep.subr.mxu0 0.0
  %184 = vmatpush1.msra.mxu0 %v174
  %185 = vmatprep.subr.mxu0 0.0
  %186 = vmatpush1.msra.mxu0 0.0
  %187 = vmatprep.subr.mxu0 0.0
  %188 = vmatpush1.msra.mxu0 0.0
  %189 = vmatprep.subr.mxu0 0.0
  %190 = vmatpush1.msra.mxu0 0.0
  %191 = vmatprep.subr.mxu0 0.0
  %192 = vmatpush1.msra.mxu0 0.0
  %193 = vmatprep.subr.mxu0 0.0
  %194 = vmatpush1.msra.mxu0 0.0
  %195 = vmatprep.subr.mxu0 0.0
  %196 = vmatpush1.msra.mxu0 0.0
  %197 = vmatprep.subr.mxu0 0.0
  %198 = vmatpush1.msra.mxu0 0.0
  %199 = vmatprep.subr.mxu0 0.0
  %200 = vmatpush1.msra.mxu0 0.0
  %201 = vmatprep.subr.mxu0 0.0
  %202 = vmatpush1.msra.mxu0 0.0
  %203 = vmatprep.subr.mxu0 0.0
  %204 = vmatpush1.msra.mxu0 0.0
  %205 = vmatprep.subr.mxu0 0.0
  %206 = vmatpush1.msra.mxu0 0.0
  %207 = vmatprep.subr.mxu0 0.0
  %208 = vmatpush1.msra.mxu0 0.0
  %209 = vmatprep.subr.mxu0 0.0
  %210 = vmatpush1.msra.mxu0 0.0
  %211 = vmatprep.subr.mxu0 0.0
  %212 = vmatpush1.msra.mxu0 0.0
  %213 = vmatprep.subr.mxu0 0.0
  %214 = vmatpush1.msra.mxu0 0.0
  %215 = vmatprep.subr.mxu0 0.0
  %216 = vmatpush1.msra.mxu0 0.0
  %217 = vmatprep.subr.mxu0 0.0
  %218 = vmatpush1.msra.mxu0 0.0
  %219 = vmatprep.subr.mxu0 0.0
  %220 = vmatpush1.msra.mxu0 0.0
  %221 = vmatprep.subr.mxu0 0.0
  %222 = vmatpush1.msra.mxu0 0.0
  %223 = vmatprep.subr.mxu0 0.0
  %224 = vmatpush1.msra.mxu0 0.0
  %225 = vmatprep.subr.mxu0 0.0
  %226 = vmatpush1.msra.mxu0 0.0
  %227 = vmatprep.subr.mxu0 0.0
  %228 = vmatpush1.msra.mxu0 0.0
  %229 = vmatprep.subr.mxu0 0.0
  %230 = vmatpush1.msra.mxu0 0.0
  %231 = vmatprep.subr.mxu0 0.0
  %232 = vmatpush1.msra.mxu0 0.0
  %233 = vmatprep.subr.mxu0 0.0
  %234 = vmatpush1.msra.mxu0 0.0
  %235 = vmatprep.subr.mxu0 0.0
  %236 = vmatpush1.msra.mxu0 0.0
  %237 = vmatprep.subr.mxu0 0.0
  %238 = vmatpush1.msra.mxu0 0.0
  %239 = vmatprep.subr.mxu0 0.0
  %240 = vmatpush1.msra.mxu0 0.0
  %241 = vmatprep.subr.mxu0 0.0
  %242 = vmatpush1.msra.mxu0 0.0
  %243 = vmatprep.subr.mxu0 0.0
  %244 = vmatpush1.msra.mxu0 0.0
  %245 = vmatprep.mubr.f32.mxu0 0.0
  %246 = vmatmul.mubr.f32.gmra.mrb[0].mxu0 %v176
  %v247 = vpop.f32.mrb[0].mxu0
  %v248 = vadd.f32 0.0, %v247
  %v249 = vpop.f32.mrb[0].mxu0
  %250 = vmatprep.mubr.f32.mxu0 0.0
  %251 = vmatmul.mubr.f32.gmra.mrb[0].mxu0 %v179
  %v252 = vpop.f32.mrb[0].mxu0
  %v253 = vadd.f32 0.0, %v252
  %v254 = vpop.f32.mrb[0].mxu0
  %255 = vdwg.mxu0
  %v256 = vsub.f32 %v248, 1.0
  %v257 = vsub.f32 %v253, 1.0
  %v258 = vld [vmem:[%s7] sm:$0xff]
  %v259 = vld [vmem:[%s7 + $0x8] sm:$0xff]
  %v260 = vld [vmem:[%s8] sm:$0xff]
  %v261 = vld [vmem:[%s8 + $0x8] sm:$0xff]
  %v262 = vld [vmem:[%s8 + $0x10] sm:$0xff]
  %v263 = vld [vmem:[%s8 + $0x18] sm:$0xff]
  %v264 = vld [vmem:[%s8 + $0x20] sm:$0xff]
  %v265 = vld [vmem:[%s8 + $0x28] sm:$0xff]
  %v266 = vld [vmem:[%s8 + $0x30] sm:$0xff]
  %v267 = vld [vmem:[%s8 + $0x38] sm:$0xff]
  %v268 = vld [vmem:[%s8 + $0x40] sm:$0xff]
  %v269 = vld [vmem:[%s8 + $0x48] sm:$0xff]
  %v270 = vld [vmem:[%s8 + $0x50] sm:$0xff]
  %v271 = vld [vmem:[%s8 + $0x58] sm:$0xff]
  %v272 = vld [vmem:[%s8 + $0x60] sm:$0xff]
  %v273 = vld [vmem:[%s8 + $0x68] sm:$0xff]
  %v274 = vld [vmem:[%s8 + $0x70] sm:$0xff]
  %v275 = vld [vmem:[%s8 + $0x78] sm:$0xff]
  %v276 = vld [vmem:[%s8 + $0x80] sm:$0xff]
  %v277 = vld [vmem:[%s8 + $0x88] sm:$0xff]
  %v278 = vld [vmem:[%s8 + $0x90] sm:$0xff]
  %v279 = vld [vmem:[%s8 + $0x98] sm:$0xff]
  %v280 = vld [vmem:[%s8 + $0xa0] sm:$0xff]
  %v281 = vld [vmem:[%s8 + $0xa8] sm:$0xff]
  %v282 = vld [vmem:[%s8 + $0xb0] sm:$0xff]
  %v283 = vld [vmem:[%s8 + $0xb8] sm:$0xff]
  %v284 = vld [vmem:[%s8 + $0xc0] sm:$0xff]
  %v285 = vld [vmem:[%s8 + $0xc8] sm:$0xff]
  %v286 = vld [vmem:[%s8 + $0xd0] sm:$0xff]
  %v287 = vld [vmem:[%s8 + $0xd8] sm:$0xff]
  %v288 = vld [vmem:[%s8 + $0xe0] sm:$0xff]
  %v289 = vld [vmem:[%s8 + $0xe8] sm:$0xff]
  %v290 = vld [vmem:[%s8 + $0xf0] sm:$0xff]
  %v291 = vld [vmem:[%s8 + $0xf8] sm:$0xff]
  %v292 = vld [vmem:[%s9] sm:$0x7]
  %vm293 = vcmask 64512
  %v295 = vsel %vm293, %v256, 0
  %v298 = vsel %vm293, %v257, 0
  %300 = vmatprep.subr.mxu0 %v259
  %301 = vmatpush1.msra.mxu0 %v258
  %302 = vmatprep.subr.mxu0 0.0
  %303 = vmatpush1.msra.mxu0 0.0
  %304 = vmatprep.subr.mxu0 0.0
  %305 = vmatpush1.msra.mxu0 0.0
  %306 = vmatprep.subr.mxu0 0.0
  %307 = vmatpush1.msra.mxu0 0.0
  %308 = vmatprep.subr.mxu0 0.0
  %309 = vmatpush1.msra.mxu0 0.0
  %310 = vmatprep.subr.mxu0 0.0
  %311 = vmatpush1.msra.mxu0 0.0
  %312 = vmatprep.subr.mxu0 0.0
  %313 = vmatpush1.msra.mxu0 0.0
  %314 = vmatprep.subr.mxu0 0.0
  %315 = vmatpush1.msra.mxu0 0.0
  %316 = vmatprep.subr.mxu0 0.0
  %317 = vmatpush1.msra.mxu0 0.0
  %318 = vmatprep.subr.mxu0 0.0
  %319 = vmatpush1.msra.mxu0 0.0
  %320 = vmatprep.subr.mxu0 0.0
  %321 = vmatpush1.msra.mxu0 0.0
  %322 = vmatprep.subr.mxu0 0.0
  %323 = vmatpush1.msra.mxu0 0.0
  %324 = vmatprep.subr.mxu0 0.0
  %325 = vmatpush1.msra.mxu0 0.0
  %326 = vmatprep.subr.mxu0 0.0
  %327 = vmatpush1.msra.mxu0 0.0
  %328 = vmatprep.subr.mxu0 0.0
  %329 = vmatpush1.msra.mxu0 0.0
  %330 = vmatprep.subr.mxu0 0.0
  %331 = vmatpush1.msra.mxu0 0.0
  %332 = vmatprep.subr.mxu0 0.0
  %333 = vmatpush1.msra.mxu0 0.0
  %334 = vmatprep.subr.mxu0 0.0
  %335 = vmatpush1.msra.mxu0 0.0
  %336 = vmatprep.subr.mxu0 0.0
  %337 = vmatpush1.msra.mxu0 0.0
  %338 = vmatprep.subr.mxu0 0.0
  %339 = vmatpush1.msra.mxu0 0.0
  %340 = vmatprep.subr.mxu0 0.0
  %341 = vmatpush1.msra.mxu0 0.0
  %342 = vmatprep.subr.mxu0 0.0
  %343 = vmatpush1.msra.mxu0 0.0
  %344 = vmatprep.subr.mxu0 0.0
  %345 = vmatpush1.msra.mxu0 0.0
  %346 = vmatprep.subr.mxu0 0.0
  %347 = vmatpush1.msra.mxu0 0.0
  %348 = vmatprep.subr.mxu0 0.0
  %349 = vmatpush1.msra.mxu0 0.0
  %350 = vmatprep.subr.mxu0 0.0
  %351 = vmatpush1.msra.mxu0 0.0
  %352 = vmatprep.subr.mxu0 0.0
  %353 = vmatpush1.msra.mxu0 0.0
  %354 = vmatprep.subr.mxu0 0.0
  %355 = vmatpush1.msra.mxu0 0.0
  %356 = vmatprep.subr.mxu0 0.0
  %357 = vmatpush1.msra.mxu0 0.0
  %358 = vmatprep.subr.mxu0 0.0
  %359 = vmatpush1.msra.mxu0 0.0
  %360 = vmatprep.subr.mxu0 0.0
  %361 = vmatpush1.msra.mxu0 0.0
  %362 = vmatprep.subr.mxu0 0.0
  %363 = vmatpush1.msra.mxu0 0.0
  %364 = vmatprep.mubr.f32.mxu0 0.0
  %365 = vmatmul.mubr.f32.gmra.mrb[0].mxu0 %v295
  %v366 = vpop.f32.mrb[0].mxu0
  %v367 = vadd.f32 0.0, %v366
  %v368 = vpop.f32.mrb[0].mxu0
  %v369 = vadd.f32 0.0, %v368
  %370 = vmatprep.mubr.f32.mxu0 0.0
  %371 = vmatmul.mubr.f32.gmra.mrb[0].mxu0 %v298
  %v372 = vpop.f32.mrb[0].mxu0
  %v373 = vadd.f32 0.0, %v372
  %v374 = vpop.f32.mrb[0].mxu0
  %v375 = vadd.f32 0.0, %v374
  %376 = vdwg.mxu0
  %v377 = vlaneseq
  %v378 = vshrl.u32 %v377, 7
  %v379 = vsub.s32 0, %v378
  %v380 = vrot.slane %v292, %v379
  %v381 = vadd.f32 %v367, %v380
  %v382 = vadd.f32 %v373, %v380
  %v383 = vmul.f32 %v381, 0.5
  %v384 = vmul.f32 %v382, 0.5
  %v385 = vtanh.pop %v383
  %v386 = vtanh.pop %v384
  %v387 = vsub.f32 %v367, %v380
  %v388 = vsub.f32 %v373, %v380
  %v389 = vmul.f32 %v387, 0.5
  %v390 = vmul.f32 %v388, 0.5
  %v391 = vtanh.pop %v389
  %v392 = vtanh.pop %v390
  %v393 = vadd.f32 %v385, %v391
  %v394 = vadd.f32 %v386, %v392
  %v395 = vmul.f32 %v393, 0.5
  %v396 = vmul.f32 %v394, 0.5
  %v397 = vlaneseq
  %v398 = vshrl.u32 %v397, 7
  %v399 = vsub.s32 1, %v398
  %v400 = vrot.slane %v292, %v399
  %v401 = vadd.f32 %v369, %v400
  %v402 = vadd.f32 %v375, %v400
  %v403 = vmul.f32 %v401, 0.5
  %v404 = vmul.f32 %v402, 0.5
  %v405 = vtanh.pop %v403
  %v406 = vtanh.pop %v404
  %v407 = vmul.f32 %v405, 0.5
  %v408 = vmul.f32 %v406, 0.5
  %v409 = vlaneseq
  %v410 = vshrl.u32 %v409, 7
  %v411 = vsub.s32 2, %v410
  %v412 = vrot.slane %v292, %v411
  %v413 = vadd.f32 %v407, %v412
  %v414 = vadd.f32 %v408, %v412
  %415 = vmatprep.subr.mxu0 0.0
  %416 = vmatpush1.msra.mxu0 %v260
  %417 = vmatprep.subr.mxu0 0.0
  %418 = vmatpush1.msra.mxu0 %v261
  %419 = vmatprep.subr.mxu0 0.0
  %420 = vmatpush1.msra.mxu0 %v262
  %421 = vmatprep.subr.mxu0 0.0
  %422 = vmatpush1.msra.mxu0 %v263
  %423 = vmatprep.subr.mxu0 0.0
  %424 = vmatpush1.msra.mxu0 %v264
  %425 = vmatprep.subr.mxu0 0.0
  %426 = vmatpush1.msra.mxu0 %v265
  %427 = vmatprep.subr.mxu0 0.0
  %428 = vmatpush1.msra.mxu0 %v266
  %429 = vmatprep.subr.mxu0 0.0
  %430 = vmatpush1.msra.mxu0 %v267
  %431 = vmatprep.subr.mxu0 0.0
  %432 = vmatpush1.msra.mxu0 %v268
  %433 = vmatprep.subr.mxu0 0.0
  %434 = vmatpush1.msra.mxu0 %v269
  %435 = vmatprep.subr.mxu0 0.0
  %436 = vmatpush1.msra.mxu0 %v270
  %437 = vmatprep.subr.mxu0 0.0
  %438 = vmatpush1.msra.mxu0 %v271
  %439 = vmatprep.subr.mxu0 0.0
  %440 = vmatpush1.msra.mxu0 %v272
  %441 = vmatprep.subr.mxu0 0.0
  %442 = vmatpush1.msra.mxu0 %v273
  %443 = vmatprep.subr.mxu0 0.0
  %444 = vmatpush1.msra.mxu0 %v274
  %445 = vmatprep.subr.mxu0 0.0
  %446 = vmatpush1.msra.mxu0 %v275
  %447 = vmatprep.subr.mxu0 0.0
  %448 = vmatpush1.msra.mxu0 %v276
  %449 = vmatprep.subr.mxu0 0.0
  %450 = vmatpush1.msra.mxu0 %v277
  %451 = vmatprep.subr.mxu0 0.0
  %452 = vmatpush1.msra.mxu0 %v278
  %453 = vmatprep.subr.mxu0 0.0
  %454 = vmatpush1.msra.mxu0 %v279
  %455 = vmatprep.subr.mxu0 0.0
  %456 = vmatpush1.msra.mxu0 %v280
  %457 = vmatprep.subr.mxu0 0.0
  %458 = vmatpush1.msra.mxu0 %v281
  %459 = vmatprep.subr.mxu0 0.0
  %460 = vmatpush1.msra.mxu0 %v282
  %461 = vmatprep.subr.mxu0 0.0
  %462 = vmatpush1.msra.mxu0 %v283
  %463 = vmatprep.subr.mxu0 0.0
  %464 = vmatpush1.msra.mxu0 %v284
  %465 = vmatprep.subr.mxu0 0.0
  %466 = vmatpush1.msra.mxu0 %v285
  %467 = vmatprep.subr.mxu0 0.0
  %468 = vmatpush1.msra.mxu0 %v286
  %469 = vmatprep.subr.mxu0 0.0
  %470 = vmatpush1.msra.mxu0 %v287
  %471 = vmatprep.subr.mxu0 0.0
  %472 = vmatpush1.msra.mxu0 %v288
  %473 = vmatprep.subr.mxu0 0.0
  %474 = vmatpush1.msra.mxu0 %v289
  %475 = vmatprep.subr.mxu0 0.0
  %476 = vmatpush1.msra.mxu0 %v290
  %477 = vmatprep.subr.mxu0 0.0
  %478 = vmatpush1.msra.mxu0 %v291
  %479 = vmatprep.mubr.f32.mxu0 %v413
  %480 = vmatmul.mubr.f32.gmra.mrb[0].mxu0 %v395
  %v481 = vpop.f32.mrb[0].mxu0
  %v482 = vadd.f32 0.0, %v481
  %v483 = vpop.f32.mrb[0].mxu0
  %484 = vmatprep.mubr.f32.mxu0 %v414
  %485 = vmatmul.mubr.f32.gmra.mrb[0].mxu0 %v396
  %v486 = vpop.f32.mrb[0].mxu0
  %v487 = vadd.f32 0.0, %v486
  %v488 = vpop.f32.mrb[0].mxu0
  %489 = vdwg.mxu0
  %v490 = vmul.f32 %v482, %v74
  %v491 = vmul.f32 %v487, %v75
  %v492 = vadd.f32 %v74, %v490
  %v493 = vadd.f32 %v75, %v491
  %496 = vrot.lane.b32.xlu0 %v482, 120
  %v497 = vpop.permute.xlu0 %496
  %498 = vrot.lane.b32.xlu0 %v487, 120
  %v499 = vpop.permute.xlu0 %498
  %v502 = vadd.f32 %v492, %v497
  %v503 = vadd.f32 %v493, %v499
  %v504 = vld [vmem:[%s10] sm:$0xff]
  %v505 = vld [vmem:[%s11] sm:$0x1]
  %v507 = vlaneseq
  %v508 = vshrl.u32 %v507, 7
  %v509 = vsub.s32 0, %v508
  %v510 = vrot.slane %v505, %v509
  %v513 = vsel %vm293, %v502, 0
  %v516 = vsel %vm293, %v503, 0
  %518 = vmatprep.subr.mxu0 0.0
  %519 = vmatpush1.msra.mxu0 %v504
  %520 = vmatprep.subr.mxu0 0.0
  %521 = vmatpush1.msra.mxu0 0.0
  %522 = vmatprep.subr.mxu0 0.0
  %523 = vmatpush1.msra.mxu0 0.0
  %524 = vmatprep.subr.mxu0 0.0
  %525 = vmatpush1.msra.mxu0 0.0
  %526 = vmatprep.subr.mxu0 0.0
  %527 = vmatpush1.msra.mxu0 0.0
  %528 = vmatprep.subr.mxu0 0.0
  %529 = vmatpush1.msra.mxu0 0.0
  %530 = vmatprep.subr.mxu0 0.0
  %531 = vmatpush1.msra.mxu0 0.0
  %532 = vmatprep.subr.mxu0 0.0
  %533 = vmatpush1.msra.mxu0 0.0
  %534 = vmatprep.subr.mxu0 0.0
  %535 = vmatpush1.msra.mxu0 0.0
  %536 = vmatprep.subr.mxu0 0.0
  %537 = vmatpush1.msra.mxu0 0.0
  %538 = vmatprep.subr.mxu0 0.0
  %539 = vmatpush1.msra.mxu0 0.0
  %540 = vmatprep.subr.mxu0 0.0
  %541 = vmatpush1.msra.mxu0 0.0
  %542 = vmatprep.subr.mxu0 0.0
  %543 = vmatpush1.msra.mxu0 0.0
  %544 = vmatprep.subr.mxu0 0.0
  %545 = vmatpush1.msra.mxu0 0.0
  %546 = vmatprep.subr.mxu0 0.0
  %547 = vmatpush1.msra.mxu0 0.0
  %548 = vmatprep.subr.mxu0 0.0
  %549 = vmatpush1.msra.mxu0 0.0
  %550 = vmatprep.subr.mxu0 0.0
  %551 = vmatpush1.msra.mxu0 0.0
  %552 = vmatprep.subr.mxu0 0.0
  %553 = vmatpush1.msra.mxu0 0.0
  %554 = vmatprep.subr.mxu0 0.0
  %555 = vmatpush1.msra.mxu0 0.0
  %556 = vmatprep.subr.mxu0 0.0
  %557 = vmatpush1.msra.mxu0 0.0
  %558 = vmatprep.subr.mxu0 0.0
  %559 = vmatpush1.msra.mxu0 0.0
  %560 = vmatprep.subr.mxu0 0.0
  %561 = vmatpush1.msra.mxu0 0.0
  %562 = vmatprep.subr.mxu0 0.0
  %563 = vmatpush1.msra.mxu0 0.0
  %564 = vmatprep.subr.mxu0 0.0
  %565 = vmatpush1.msra.mxu0 0.0
  %566 = vmatprep.subr.mxu0 0.0
  %567 = vmatpush1.msra.mxu0 0.0
  %568 = vmatprep.subr.mxu0 0.0
  %569 = vmatpush1.msra.mxu0 0.0
  %570 = vmatprep.subr.mxu0 0.0
  %571 = vmatpush1.msra.mxu0 0.0
  %572 = vmatprep.subr.mxu0 0.0
  %573 = vmatpush1.msra.mxu0 0.0
  %574 = vmatprep.subr.mxu0 0.0
  %575 = vmatpush1.msra.mxu0 0.0
  %576 = vmatprep.subr.mxu0 0.0
  %577 = vmatpush1.msra.mxu0 0.0
  %578 = vmatprep.subr.mxu0 0.0
  %579 = vmatpush1.msra.mxu0 0.0
  %580 = vmatprep.subr.mxu0 0.0
  %581 = vmatpush1.msra.mxu0 0.0
  %582 = vmatprep.mubr.f32.mxu0 0.0
  %583 = vmatmul.mubr.f32.gmra.mrb[0].mxu0 %v513
  %v584 = vpop.f32.mrb[0].mxu0
  %v585 = vadd.f32 %v510, %v584
  %v586 = vpop.f32.mrb[0].mxu0
  %587 = vmatprep.mubr.f32.mxu0 0.0
  %588 = vmatmul.mubr.f32.gmra.mrb[0].mxu0 %v516
  %v589 = vpop.f32.mrb[0].mxu0
  %v590 = vadd.f32 %v510, %v589
  %v591 = vpop.f32.mrb[0].mxu0
  %592 = vdwg.mxu0
  %vm593 = vcmp.gt.f32.partialorder %v585, 0.0
  %vm594 = vcmp.gt.f32.partialorder %v590, 0.0
  %v595 = vmul.f32 %v585, 0.01
  %v596 = vmul.f32 %v590, 0.01
  %v597 = vsel %vm593, %v585, %v595
  %v598 = vsel %vm594, %v590, %v596
  %vm599 = vcmp.gt.f32.partialorder %v597, 0.0
  %vm600 = vcmp.gt.f32.partialorder %v598, 0.0
  %v601 = vmul.f32 %v597, 0.01
  %v602 = vmul.f32 %v598, 0.01
  %v603 = vsel %vm599, %v597, %v601
  %v604 = vsel %vm600, %v598, %v602
  %605 = vmatprep.subr.mxu0 0.0
  %606 = vmatpush1.msra.mxu0 %v603
  %607 = vmatprep.subr.mxu0 0.0
  %608 = vmatpush1.msra.mxu0 %v604
  %609 = vmatprep.subr.mxu0 0.0
  %610 = vmatpush1.msra.mxu0 0.0
  %611 = vmatprep.subr.mxu0 0.0
  %612 = vmatpush1.msra.mxu0 0.0
  %613 = vmatprep.subr.mxu0 0.0
  %614 = vmatpush1.msra.mxu0 0.0
  %615 = vmatprep.subr.mxu0 0.0
  %616 = vmatpush1.msra.mxu0 0.0
  %617 = vmatprep.subr.mxu0 0.0
  %618 = vmatpush1.msra.mxu0 0.0
  %619 = vmatprep.subr.mxu0 0.0
  %620 = vmatpush1.msra.mxu0 0.0
  %621 = vmatprep.subr.mxu0 0.0
  %622 = vmatpush1.msra.mxu0 0.0
  %623 = vmatprep.subr.mxu0 0.0
  %624 = vmatpush1.msra.mxu0 0.0
  %625 = vmatprep.subr.mxu0 0.0
  %626 = vmatpush1.msra.mxu0 0.0
  %627 = vmatprep.subr.mxu0 0.0
  %628 = vmatpush1.msra.mxu0 0.0
  %629 = vmatprep.subr.mxu0 0.0
  %630 = vmatpush1.msra.mxu0 0.0
  %631 = vmatprep.subr.mxu0 0.0
  %632 = vmatpush1.msra.mxu0 0.0
  %633 = vmatprep.subr.mxu0 0.0
  %634 = vmatpush1.msra.mxu0 0.0
  %635 = vmatprep.subr.mxu0 0.0
  %636 = vmatpush1.msra.mxu0 0.0
  %637 = vmatprep.subr.mxu0 0.0
  %638 = vmatpush1.msra.mxu0 0.0
  %639 = vmatprep.subr.mxu0 0.0
  %640 = vmatpush1.msra.mxu0 0.0
  %641 = vmatprep.subr.mxu0 0.0
  %642 = vmatpush1.msra.mxu0 0.0
  %643 = vmatprep.subr.mxu0 0.0
  %644 = vmatpush1.msra.mxu0 0.0
  %645 = vmatprep.subr.mxu0 0.0
  %646 = vmatpush1.msra.mxu0 0.0
  %647 = vmatprep.subr.mxu0 0.0
  %648 = vmatpush1.msra.mxu0 0.0
  %649 = vmatprep.subr.mxu0 0.0
  %650 = vmatpush1.msra.mxu0 0.0
  %651 = vmatprep.subr.mxu0 0.0
  %652 = vmatpush1.msra.mxu0 0.0
  %653 = vmatprep.subr.mxu0 0.0
  %654 = vmatpush1.msra.mxu0 0.0
  %655 = vmatprep.subr.mxu0 0.0
  %656 = vmatpush1.msra.mxu0 0.0
  %657 = vmatprep.subr.mxu0 0.0
  %658 = vmatpush1.msra.mxu0 0.0
  %659 = vmatprep.subr.mxu0 0.0
  %660 = vmatpush1.msra.mxu0 0.0
  %661 = vmatprep.subr.mxu0 0.0
  %662 = vmatpush1.msra.mxu0 0.0
  %663 = vmatprep.subr.mxu0 0.0
  %664 = vmatpush1.msra.mxu0 0.0
  %665 = vmatprep.subr.mxu0 0.0
  %666 = vmatpush1.msra.mxu0 0.0
  %667 = vmatprep.subr.mxu0 0.0
  %668 = vmatpush1.msra.mxu0 0.0
  %669 = vmatprep.mubr.f32.mxu0 0.0
  %670 = vmatmul.mubr.f32.gmra.mrb[0].mxu0 %v78
  %v671 = vpop.f32.mrb[0].mxu0
  %v672 = vadd.f32 0.0, %v671
  %v673 = vpop.f32.mrb[0].mxu0
  %674 = vmatprep.mubr.f32.mxu0 0.0
  %675 = vmatmul.mubr.f32.gmra.mrb[0].mxu0 %v81
  %v676 = vpop.f32.mrb[0].mxu0
  %v677 = vadd.f32 0.0, %v676
  %v678 = vpop.f32.mrb[0].mxu0
  %679 = vdwg.mxu0
  %v680 = vsub.f32 %v672, 1.0
  %v681 = vsub.f32 %v677, 1.0
  %v682 = vmul.f32 %v160, %v680
  %v683 = vmul.f32 %v160, %v681
  %vm684 = vcmp.gt.f32.partialorder %v682, 0.0
  %vm685 = vcmp.gt.f32.partialorder %v683, 0.0
  %v686 = vmul.f32 %v682, 1.442695
  %v687 = vpow.pop %v686
  %v688 = vmul.f32 %v683, 1.442695
  %v689 = vpow.pop %v688
  %v690 = vsub.f32 %v687, 1.0
  %v691 = vsub.f32 %v689, 1.0
  %v692 = vsel %vm684, %v682, %v690
  %v693 = vsel %vm685, %v683, %v691
  %v694 = vadd.f32 %v692, 1.0
  %v695 = vadd.f32 %v693, 1.0
  %696 = vmatprep.subr.mxu0 0.0
  %697 = vmatpush1.msra.mxu0 %v694
  %698 = vmatprep.subr.mxu0 0.0
  %699 = vmatpush1.msra.mxu0 %v695
  %700 = vmatprep.subr.mxu0 0.0
  %701 = vmatpush1.msra.mxu0 0.0
  %702 = vmatprep.subr.mxu0 0.0
  %703 = vmatpush1.msra.mxu0 0.0
  %704 = vmatprep.subr.mxu0 0.0
  %705 = vmatpush1.msra.mxu0 0.0
  %706 = vmatprep.subr.mxu0 0.0
  %707 = vmatpush1.msra.mxu0 0.0
  %708 = vmatprep.subr.mxu0 0.0
  %709 = vmatpush1.msra.mxu0 0.0
  %710 = vmatprep.subr.mxu0 0.0
  %711 = vmatpush1.msra.mxu0 0.0
  %712 = vmatprep.subr.mxu0 0.0
  %713 = vmatpush1.msra.mxu0 0.0
  %714 = vmatprep.subr.mxu0 0.0
  %715 = vmatpush1.msra.mxu0 0.0
  %716 = vmatprep.subr.mxu0 0.0
  %717 = vmatpush1.msra.mxu0 0.0
  %718 = vmatprep.subr.mxu0 0.0
  %719 = vmatpush1.msra.mxu0 0.0
  %720 = vmatprep.subr.mxu0 0.0
  %721 = vmatpush1.msra.mxu0 0.0
  %722 = vmatprep.subr.mxu0 0.0
  %723 = vmatpush1.msra.mxu0 0.0
  %724 = vmatprep.subr.mxu0 0.0
  %725 = vmatpush1.msra.mxu0 0.0
  %726 = vmatprep.subr.mxu0 0.0
  %727 = vmatpush1.msra.mxu0 0.0
  %728 = vmatprep.subr.mxu0 0.0
  %729 = vmatpush1.msra.mxu0 0.0
  %730 = vmatprep.subr.mxu0 0.0
  %731 = vmatpush1.msra.mxu0 0.0
  %732 = vmatprep.subr.mxu0 0.0
  %733 = vmatpush1.msra.mxu0 0.0
  %734 = vmatprep.subr.mxu0 0.0
  %735 = vmatpush1.msra.mxu0 0.0
  %736 = vmatprep.subr.mxu0 0.0
  %737 = vmatpush1.msra.mxu0 0.0
  %738 = vmatprep.subr.mxu0 0.0
  %739 = vmatpush1.msra.mxu0 0.0
  %740 = vmatprep.subr.mxu0 0.0
  %741 = vmatpush1.msra.mxu0 0.0
  %742 = vmatprep.subr.mxu0 0.0
  %743 = vmatpush1.msra.mxu0 0.0
  %744 = vmatprep.subr.mxu0 0.0
  %745 = vmatpush1.msra.mxu0 0.0
  %746 = vmatprep.subr.mxu0 0.0
  %747 = vmatpush1.msra.mxu0 0.0
  %748 = vmatprep.subr.mxu0 0.0
  %749 = vmatpush1.msra.mxu0 0.0
  %750 = vmatprep.subr.mxu0 0.0
  %751 = vmatpush1.msra.mxu0 0.0
  %752 = vmatprep.subr.mxu0 0.0
  %753 = vmatpush1.msra.mxu0 0.0
  %754 = vmatprep.subr.mxu0 0.0
  %755 = vmatpush1.msra.mxu0 0.0
  %756 = vmatprep.subr.mxu0 0.0
  %757 = vmatpush1.msra.mxu0 0.0
  %758 = vmatprep.subr.mxu0 0.0
  %759 = vmatpush1.msra.mxu0 0.0
  %760 = vmatprep.mubr.f32.mxu0 0.0
  %761 = vmatmul.mubr.f32.gmra.mrb[0].mxu0 %v176
  %v762 = vpop.f32.mrb[0].mxu0
  %v763 = vadd.f32 0.0, %v762
  %v764 = vpop.f32.mrb[0].mxu0
  %765 = vmatprep.mubr.f32.mxu0 0.0
  %766 = vmatmul.mubr.f32.gmra.mrb[0].mxu0 %v179
  %v767 = vpop.f32.mrb[0].mxu0
  %v768 = vadd.f32 0.0, %v767
  %v769 = vpop.f32.mrb[0].mxu0
  %770 = vdwg.mxu0
  %v771 = vsub.f32 %v763, 1.0
  %v772 = vsub.f32 %v768, 1.0
  %s773 = scalar_lea.vmem %s7, 16
  %v774 = vld [vmem:[%s773] sm:$0xff]
  %v775 = vld [vmem:[%s773 + $0x8] sm:$0xff]
  %s776 = scalar_lea.vmem %s8, 256
  %v777 = vld [vmem:[%s776] sm:$0xff]
  %v778 = vld [vmem:[%s776 + $0x8] sm:$0xff]
  %v779 = vld [vmem:[%s776 + $0x10] sm:$0xff]
  %v780 = vld [vmem:[%s776 + $0x18] sm:$0xff]
  %v781 = vld [vmem:[%s776 + $0x20] sm:$0xff]
  %v782 = vld [vmem:[%s776 + $0x28] sm:$0xff]
  %v783 = vld [vmem:[%s776 + $0x30] sm:$0xff]
  %v784 = vld [vmem:[%s776 + $0x38] sm:$0xff]
  %v785 = vld [vmem:[%s776 + $0x40] sm:$0xff]
  %v786 = vld [vmem:[%s776 + $0x48] sm:$0xff]
  %v787 = vld [vmem:[%s776 + $0x50] sm:$0xff]
  %v788 = vld [vmem:[%s776 + $0x58] sm:$0xff]
  %v789 = vld [vmem:[%s776 + $0x60] sm:$0xff]
  %v790 = vld [vmem:[%s776 + $0x68] sm:$0xff]
  %v791 = vld [vmem:[%s776 + $0x70] sm:$0xff]
  %v792 = vld [vmem:[%s776 + $0x78] sm:$0xff]
  %v793 = vld [vmem:[%s776 + $0x80] sm:$0xff]
  %v794 = vld [vmem:[%s776 + $0x88] sm:$0xff]
  %v795 = vld [vmem:[%s776 + $0x90] sm:$0xff]
  %v796 = vld [vmem:[%s776 + $0x98] sm:$0xff]
  %v797 = vld [vmem:[%s776 + $0xa0] sm:$0xff]
  %v798 = vld [vmem:[%s776 + $0xa8] sm:$0xff]
  %v799 = vld [vmem:[%s776 + $0xb0] sm:$0xff]
  %v800 = vld [vmem:[%s776 + $0xb8] sm:$0xff]
  %v801 = vld [vmem:[%s776 + $0xc0] sm:$0xff]
  %v802 = vld [vmem:[%s776 + $0xc8] sm:$0xff]
  %v803 = vld [vmem:[%s776 + $0xd0] sm:$0xff]
  %v804 = vld [vmem:[%s776 + $0xd8] sm:$0xff]
  %v805 = vld [vmem:[%s776 + $0xe0] sm:$0xff]
  %v806 = vld [vmem:[%s776 + $0xe8] sm:$0xff]
  %v807 = vld [vmem:[%s776 + $0xf0] sm:$0xff]
  %v808 = vld [vmem:[%s776 + $0xf8] sm:$0xff]
  %s809 = scalar_lea.vmem %s9, 4
  %v810 = vld [vmem:[%s809] sm:$0x7]
  %v812 = vsel %vm293, %v771, 0
  %v815 = vsel %vm293, %v772, 0
  %817 = vmatprep.subr.mxu0 %v775
  %818 = vmatpush1.msra.mxu0 %v774
  %819 = vmatprep.subr.mxu0 0.0
  %820 = vmatpush1.msra.mxu0 0.0
  %821 = vmatprep.subr.mxu0 0.0
  %822 = vmatpush1.msra.mxu0 0.0
  %823 = vmatprep.subr.mxu0 0.0
  %824 = vmatpush1.msra.mxu0 0.0
  %825 = vmatprep.subr.mxu0 0.0
  %826 = vmatpush1.msra.mxu0 0.0
  %827 = vmatprep.subr.mxu0 0.0
  %828 = vmatpush1.msra.mxu0 0.0
  %829 = vmatprep.subr.mxu0 0.0
  %830 = vmatpush1.msra.mxu0 0.0
  %831 = vmatprep.subr.mxu0 0.0
  %832 = vmatpush1.msra.mxu0 0.0
  %833 = vmatprep.subr.mxu0 0.0
  %834 = vmatpush1.msra.mxu0 0.0
  %835 = vmatprep.subr.mxu0 0.0
  %836 = vmatpush1.msra.mxu0 0.0
  %837 = vmatprep.subr.mxu0 0.0
  %838 = vmatpush1.msra.mxu0 0.0
  %839 = vmatprep.subr.mxu0 0.0
  %840 = vmatpush1.msra.mxu0 0.0
  %841 = vmatprep.subr.mxu0 0.0
  %842 = vmatpush1.msra.mxu0 0.0
  %843 = vmatprep.subr.mxu0 0.0
  %844 = vmatpush1.msra.mxu0 0.0
  %845 = vmatprep.subr.mxu0 0.0
  %846 = vmatpush1.msra.mxu0 0.0
  %847 = vmatprep.subr.mxu0 0.0
  %848 = vmatpush1.msra.mxu0 0.0
  %849 = vmatprep.subr.mxu0 0.0
  %850 = vmatpush1.msra.mxu0 0.0
  %851 = vmatprep.subr.mxu0 0.0
  %852 = vmatpush1.msra.mxu0 0.0
  %853 = vmatprep.subr.mxu0 0.0
  %854 = vmatpush1.msra.mxu0 0.0
  %855 = vmatprep.subr.mxu0 0.0
  %856 = vmatpush1.msra.mxu0 0.0
  %857 = vmatprep.subr.mxu0 0.0
  %858 = vmatpush1.msra.mxu0 0.0
  %859 = vmatprep.subr.mxu0 0.0
  %860 = vmatpush1.msra.mxu0 0.0
  %861 = vmatprep.subr.mxu0 0.0
  %862 = vmatpush1.msra.mxu0 0.0
  %863 = vmatprep.subr.mxu0 0.0
  %864 = vmatpush1.msra.mxu0 0.0
  %865 = vmatprep.subr.mxu0 0.0
  %866 = vmatpush1.msra.mxu0 0.0
  %867 = vmatprep.subr.mxu0 0.0
  %868 = vmatpush1.msra.mxu0 0.0
  %869 = vmatprep.subr.mxu0 0.0
  %870 = vmatpush1.msra.mxu0 0.0
  %871 = vmatprep.subr.mxu0 0.0
  %872 = vmatpush1.msra.mxu0 0.0
  %873 = vmatprep.subr.mxu0 0.0
  %874 = vmatpush1.msra.mxu0 0.0
  %875 = vmatprep.subr.mxu0 0.0
  %876 = vmatpush1.msra.mxu0 0.0
  %877 = vmatprep.subr.mxu0 0.0
  %878 = vmatpush1.msra.mxu0 0.0
  %879 = vmatprep.subr.mxu0 0.0
  %880 = vmatpush1.msra.mxu0 0.0
  %881 = vmatprep.mubr.f32.mxu0 0.0
  %882 = vmatmul.mubr.f32.gmra.mrb[0].mxu0 %v812
  %v883 = vpop.f32.mrb[0].mxu0
  %v884 = vadd.f32 0.0, %v883
  %v885 = vpop.f32.mrb[0].mxu0
  %v886 = vadd.f32 0.0, %v885
  %887 = vmatprep.mubr.f32.mxu0 0.0
  %888 = vmatmul.mubr.f32.gmra.mrb[0].mxu0 %v815
  %v889 = vpop.f32.mrb[0].mxu0
  %v890 = vadd.f32 0.0, %v889
  %v891 = vpop.f32.mrb[0].mxu0
  %v892 = vadd.f32 0.0, %v891
  %893 = vdwg.mxu0
  %v894 = vlaneseq
  %v895 = vshrl.u32 %v894, 7
  %v896 = vsub.s32 0, %v895
  %v897 = vrot.slane %v810, %v896
  %v898 = vadd.f32 %v884, %v897
  %v899 = vadd.f32 %v890, %v897
  %v900 = vmul.f32 %v898, 0.5
  %v901 = vmul.f32 %v899, 0.5
  %v902 = vtanh.pop %v900
  %v903 = vtanh.pop %v901
  %v904 = vsub.f32 %v884, %v897
  %v905 = vsub.f32 %v890, %v897
  %v906 = vmul.f32 %v904, 0.5
  %v907 = vmul.f32 %v905, 0.5
  %v908 = vtanh.pop %v906
  %v909 = vtanh.pop %v907
  %v910 = vadd.f32 %v902, %v908
  %v911 = vadd.f32 %v903, %v909
  %v912 = vmul.f32 %v910, 0.5
  %v913 = vmul.f32 %v911, 0.5
  %v914 = vlaneseq
  %v915 = vshrl.u32 %v914, 7
  %v916 = vsub.s32 1, %v915
  %v917 = vrot.slane %v810, %v916
  %v918 = vadd.f32 %v886, %v917
  %v919 = vadd.f32 %v892, %v917
  %v920 = vmul.f32 %v918, 0.5
  %v921 = vmul.f32 %v919, 0.5
  %v922 = vtanh.pop %v920
  %v923 = vtanh.pop %v921
  %v924 = vmul.f32 %v922, 0.5
  %v925 = vmul.f32 %v923, 0.5
  %v926 = vlaneseq
  %v927 = vshrl.u32 %v926, 7
  %v928 = vsub.s32 2, %v927
  %v929 = vrot.slane %v810, %v928
  %v930 = vadd.f32 %v924, %v929
  %v931 = vadd.f32 %v925, %v929
  %932 = vmatprep.subr.mxu0 0.0
  %933 = vmatpush1.msra.mxu0 %v777
  %934 = vmatprep.subr.mxu0 0.0
  %935 = vmatpush1.msra.mxu0 %v778
  %936 = vmatprep.subr.mxu0 0.0
  %937 = vmatpush1.msra.mxu0 %v779
  %938 = vmatprep.subr.mxu0 0.0
  %939 = vmatpush1.msra.mxu0 %v780
  %940 = vmatprep.subr.mxu0 0.0
  %941 = vmatpush1.msra.mxu0 %v781
  %942 = vmatprep.subr.mxu0 0.0
  %943 = vmatpush1.msra.mxu0 %v782
  %944 = vmatprep.subr.mxu0 0.0
  %945 = vmatpush1.msra.mxu0 %v783
  %946 = vmatprep.subr.mxu0 0.0
  %947 = vmatpush1.msra.mxu0 %v784
  %948 = vmatprep.subr.mxu0 0.0
  %949 = vmatpush1.msra.mxu0 %v785
  %950 = vmatprep.subr.mxu0 0.0
  %951 = vmatpush1.msra.mxu0 %v786
  %952 = vmatprep.subr.mxu0 0.0
  %953 = vmatpush1.msra.mxu0 %v787
  %954 = vmatprep.subr.mxu0 0.0
  %955 = vmatpush1.msra.mxu0 %v788
  %956 = vmatprep.subr.mxu0 0.0
  %957 = vmatpush1.msra.mxu0 %v789
  %958 = vmatprep.subr.mxu0 0.0
  %959 = vmatpush1.msra.mxu0 %v790
  %960 = vmatprep.subr.mxu0 0.0
  %961 = vmatpush1.msra.mxu0 %v791
  %962 = vmatprep.subr.mxu0 0.0
  %963 = vmatpush1.msra.mxu0 %v792
  %964 = vmatprep.subr.mxu0 0.0
  %965 = vmatpush1.msra.mxu0 %v793
  %966 = vmatprep.subr.mxu0 0.0
  %967 = vmatpush1.msra.mxu0 %v794
  %968 = vmatprep.subr.mxu0 0.0
  %969 = vmatpush1.msra.mxu0 %v795
  %970 = vmatprep.subr.mxu0 0.0
  %971 = vmatpush1.msra.mxu0 %v796
  %972 = vmatprep.subr.mxu0 0.0
  %973 = vmatpush1.msra.mxu0 %v797
  %974 = vmatprep.subr.mxu0 0.0
  %975 = vmatpush1.msra.mxu0 %v798
  %976 = vmatprep.subr.mxu0 0.0
  %977 = vmatpush1.msra.mxu0 %v799
  %978 = vmatprep.subr.mxu0 0.0
  %979 = vmatpush1.msra.mxu0 %v800
  %980 = vmatprep.subr.mxu0 0.0
  %981 = vmatpush1.msra.mxu0 %v801
  %982 = vmatprep.subr.mxu0 0.0
  %983 = vmatpush1.msra.mxu0 %v802
  %984 = vmatprep.subr.mxu0 0.0
  %985 = vmatpush1.msra.mxu0 %v803
  %986 = vmatprep.subr.mxu0 0.0
  %987 = vmatpush1.msra.mxu0 %v804
  %988 = vmatprep.subr.mxu0 0.0
  %989 = vmatpush1.msra.mxu0 %v805
  %990 = vmatprep.subr.mxu0 0.0
  %991 = vmatpush1.msra.mxu0 %v806
  %992 = vmatprep.subr.mxu0 0.0
  %993 = vmatpush1.msra.mxu0 %v807
  %994 = vmatprep.subr.mxu0 0.0
  %995 = vmatpush1.msra.mxu0 %v808
  %996 = vmatprep.mubr.f32.mxu0 %v930
  %997 = vmatmul.mubr.f32.gmra.mrb[0].mxu0 %v912
  %v998 = vpop.f32.mrb[0].mxu0
  %v999 = vadd.f32 0.0, %v998
  %v1000 = vpop.f32.mrb[0].mxu0
  %1001 = vmatprep.mubr.f32.mxu0 %v931
  %1002 = vmatmul.mubr.f32.gmra.mrb[0].mxu0 %v913
  %v1003 = vpop.f32.mrb[0].mxu0
  %v1004 = vadd.f32 0.0, %v1003
  %v1005 = vpop.f32.mrb[0].mxu0
  %1006 = vdwg.mxu0
  %v1007 = vmul.f32 %v999, %v603
  %v1008 = vmul.f32 %v1004, %v604
  %v1009 = vadd.f32 %v603, %v1007
  %v1010 = vadd.f32 %v604, %v1008
  %1013 = vrot.lane.b32.xlu0 %v999, 120
  %v1014 = vpop.permute.xlu0 %1013
  %1015 = vrot.lane.b32.xlu0 %v1004, 120
  %v1016 = vpop.permute.xlu0 %1015
  %v1019 = vadd.f32 %v1009, %v1014
  %v1020 = vadd.f32 %v1010, %v1016
  %s1021 = scalar_lea.vmem %s10, 8
  %v1022 = vld [vmem:[%s1021] sm:$0xff]
  %s1023 = scalar_lea.vmem %s11, 1
  %v1024 = vld [vmem:[%s1023] sm:$0x1]
  %v1026 = vlaneseq
  %v1027 = vshrl.u32 %v1026, 7
  %v1028 = vsub.s32 0, %v1027
  %v1029 = vrot.slane %v1024, %v1028
  %v1032 = vsel %vm293, %v1019, 0
  %v1035 = vsel %vm293, %v1020, 0
  %1037 = vmatprep.subr.mxu0 0.0
  %1038 = vmatpush1.msra.mxu0 %v1022
  %1039 = vmatprep.subr.mxu0 0.0
  %1040 = vmatpush1.msra.mxu0 0.0
  %1041 = vmatprep.subr.mxu0 0.0
  %1042 = vmatpush1.msra.mxu0 0.0
  %1043 = vmatprep.subr.mxu0 0.0
  %1044 = vmatpush1.msra.mxu0 0.0
  %1045 = vmatprep.subr.mxu0 0.0
  %1046 = vmatpush1.msra.mxu0 0.0
  %1047 = vmatprep.subr.mxu0 0.0
  %1048 = vmatpush1.msra.mxu0 0.0
  %1049 = vmatprep.subr.mxu0 0.0
  %1050 = vmatpush1.msra.mxu0 0.0
  %1051 = vmatprep.subr.mxu0 0.0
  %1052 = vmatpush1.msra.mxu0 0.0
  %1053 = vmatprep.subr.mxu0 0.0
  %1054 = vmatpush1.msra.mxu0 0.0
  %1055 = vmatprep.subr.mxu0 0.0
  %1056 = vmatpush1.msra.mxu0 0.0
  %1057 = vmatprep.subr.mxu0 0.0
  %1058 = vmatpush1.msra.mxu0 0.0
  %1059 = vmatprep.subr.mxu0 0.0
  %1060 = vmatpush1.msra.mxu0 0.0
  %1061 = vmatprep.subr.mxu0 0.0
  %1062 = vmatpush1.msra.mxu0 0.0
  %1063 = vmatprep.subr.mxu0 0.0
  %1064 = vmatpush1.msra.mxu0 0.0
  %1065 = vmatprep.subr.mxu0 0.0
  %1066 = vmatpush1.msra.mxu0 0.0
  %1067 = vmatprep.subr.mxu0 0.0
  %1068 = vmatpush1.msra.mxu0 0.0
  %1069 = vmatprep.subr.mxu0 0.0
  %1070 = vmatpush1.msra.mxu0 0.0
  %1071 = vmatprep.subr.mxu0 0.0
  %1072 = vmatpush1.msra.mxu0 0.0
  %1073 = vmatprep.subr.mxu0 0.0
  %1074 = vmatpush1.msra.mxu0 0.0
  %1075 = vmatprep.subr.mxu0 0.0
  %1076 = vmatpush1.msra.mxu0 0.0
  %1077 = vmatprep.subr.mxu0 0.0
  %1078 = vmatpush1.msra.mxu0 0.0
  %1079 = vmatprep.subr.mxu0 0.0
  %1080 = vmatpush1.msra.mxu0 0.0
  %1081 = vmatprep.subr.mxu0 0.0
  %1082 = vmatpush1.msra.mxu0 0.0
  %1083 = vmatprep.subr.mxu0 0.0
  %1084 = vmatpush1.msra.mxu0 0.0
  %1085 = vmatprep.subr.mxu0 0.0
  %1086 = vmatpush1.msra.mxu0 0.0
  %1087 = vmatprep.subr.mxu0 0.0
  %1088 = vmatpush1.msra.mxu0 0.0
  %1089 = vmatprep.subr.mxu0 0.0
  %1090 = vmatpush1.msra.mxu0 0.0
  %1091 = vmatprep.subr.mxu0 0.0
  %1092 = vmatpush1.msra.mxu0 0.0
  %1093 = vmatprep.subr.mxu0 0.0
  %1094 = vmatpush1.msra.mxu0 0.0
  %1095 = vmatprep.subr.mxu0 0.0
  %1096 = vmatpush1.msra.mxu0 0.0
  %1097 = vmatprep.subr.mxu0 0.0
  %1098 = vmatpush1.msra.mxu0 0.0
  %1099 = vmatprep.subr.mxu0 0.0
  %1100 = vmatpush1.msra.mxu0 0.0
  %1101 = vmatprep.mubr.f32.mxu0 0.0
  %1102 = vmatmul.mubr.f32.gmra.mrb[0].mxu0 %v1032
  %v1103 = vpop.f32.mrb[0].mxu0
  %v1104 = vadd.f32 %v1029, %v1103
  %v1105 = vpop.f32.mrb[0].mxu0
  %1106 = vmatprep.mubr.f32.mxu0 0.0
  %1107 = vmatmul.mubr.f32.gmra.mrb[0].mxu0 %v1035
  %v1108 = vpop.f32.mrb[0].mxu0
  %v1109 = vadd.f32 %v1029, %v1108
  %v1110 = vpop.f32.mrb[0].mxu0
  %1111 = vdwg.mxu0
  %vm1112 = vcmp.gt.f32.partialorder %v1104, 0.0
  %vm1113 = vcmp.gt.f32.partialorder %v1109, 0.0
  %v1114 = vmul.f32 %v1104, 0.01
  %v1115 = vmul.f32 %v1109, 0.01
  %v1116 = vsel %vm1112, %v1104, %v1114
  %v1117 = vsel %vm1113, %v1109, %v1115
  %vm1118 = vcmp.gt.f32.partialorder %v1116, 0.0
  %vm1119 = vcmp.gt.f32.partialorder %v1117, 0.0
  %v1120 = vmul.f32 %v1116, 0.01
  %v1121 = vmul.f32 %v1117, 0.01
  %v1122 = vsel %vm1118, %v1116, %v1120
  %v1123 = vsel %vm1119, %v1117, %v1121
  %v1124 = vld [vmem:[%s5] sm:$0x1]
  %v1126 = vlaneseq
  %v1127 = vshrl.u32 %v1126, 7
  %v1128 = vsub.s32 0, %v1127
  %v1129 = vrot.slane %v1124, %v1128
  %v1131 = vmul.f32 %v1122, %v1129
  %v1132 = vmul.f32 %v1123, %v1129
  %v1133 = vsel %vm293, %v1131, 0.0
  %1134 = vadd.xlane.f32.xlu0 %v1133
  %v1135 = vpop.xlane.xlu0 %1134
  %v1136 = vsel %vm293, %v1132, 0.0
  %1137 = vadd.xlane.f32.xlu0 %v1136
  %v1138 = vpop.xlane.xlu0 %1137
  %vm1139 = vcmp.gt.f32.partialorder %v1135, 0.0
  %vm1140 = vcmp.gt.f32.partialorder %v1138, 0.0
  %v1141 = vmul.f32 %v1135, 0.01
  %v1142 = vmul.f32 %v1138, 0.01
  %v1143 = vsel %vm1139, %v1135, %v1141
  %v1144 = vsel %vm1140, %v1138, %v1142
  %vm1145 = vcmask 7168
  %1146 = vst.msk [vmem:[%s12] sm:$0xff] %vm1145, %v1143
  %1147 = vst.msk [vmem:[%s12 + $0x8] sm:$0xff] %vm1145, %v1144
  %v1148 = vld [vmem:[%s6] sm:$0x1]
  %v1150 = vlaneseq
  %v1151 = vshrl.u32 %v1150, 7
  %v1152 = vsub.s32 0, %v1151
  %v1153 = vrot.slane %v1148, %v1152
  %v1155 = vmul.f32 %v694, %v1153
  %v1156 = vmul.f32 %v695, %v1153
  %v1157 = vsel %vm293, %v1155, 0.0
  %1158 = vadd.xlane.f32.xlu0 %v1157
  %v1159 = vpop.xlane.xlu0 %1158
  %v1160 = vsel %vm293, %v1156, 0.0
  %1161 = vadd.xlane.f32.xlu0 %v1160
  %v1162 = vpop.xlane.xlu0 %1161
  %vm1163 = vcmp.gt.f32.partialorder %v1159, 0.0
  %vm1164 = vcmp.gt.f32.partialorder %v1162, 0.0
  %v1165 = vmul.f32 %v1159, 0.01
  %v1166 = vmul.f32 %v1162, 0.01
  %v1167 = vsel %vm1163, %v1159, %v1165
  %v1168 = vsel %vm1164, %v1162, %v1166
  %1169 = vst.msk [vmem:[%s13] sm:$0xff] %vm1145, %v1167
  %1170 = vst.msk [vmem:[%s13 + $0x8] sm:$0xff] %vm1145, %v1168
  // Predicated region
  $region50: #{tpu_custom_call.1} parent=0 // pred_check
    _
  $region51: #{tpu_custom_call.1} parent=0 // pred_check_branch
    %1172 = sbr.rel (0) target = $region53
  $region52: #{tpu_custom_call.1} parent=0 // pred_region
    _
  $region53: #{tpu_custom_call.1} parent=0 // pred_fallthru
    _
  // Predicated region
  $region54: #{tpu_custom_call.1} parent=0 // pred_check
    _
  $region55: #{tpu_custom_call.1} parent=0 // pred_check_branch
    %1174 = sbr.rel (0) target = $region57
  $region56: #{tpu_custom_call.1} parent=0 // pred_region
    _
  $region57: #{tpu_custom_call.1} parent=0 // pred_fallthru
    _
  // Predicated region
  $region58: #{tpu_custom_call.1} parent=0 // pred_check
    _
  $region59: #{tpu_custom_call.1} parent=0 // pred_check_branch
    %1176 = sbr.rel (0) target = $region61
  $region60: #{tpu_custom_call.1} parent=0 // pred_region
    _
  $region61: #{tpu_custom_call.1} parent=0 // pred_fallthru
    _
  // Predicated region
  $region62: #{tpu_custom_call.1} parent=0 // pred_check
    _
  $region63: #{tpu_custom_call.1} parent=0 // pred_check_branch
    %1178 = sbr.rel (0) target = $region65
  $region64: #{tpu_custom_call.1} parent=0 // pred_region
    _
  $region65: #{tpu_custom_call.1} parent=0 // pred_fallthru
    _

</llo_original>
